<compile_context>
chip_gen: v6e
topology: v6e:2x2x1
jax: 0.10.0
libtpu: 0.0.40
codegen_flags: <defaults>
</compile_context>

<pallas_src>
import functools
import math

import jax
import jax.numpy as jnp
from jax import lax
from jax.experimental import pallas as pl
from jax.experimental.pallas import tpu as pltpu

# ----------------------- model config (synthetic, small) -----------------------
TEXTDIM = 32          # hidden_size
MOSIVISUALDIM = 20    # VISUALDIM for dataset='mosi' (synthetic small value)
CMUSPEECHDIM = 12     # SPEECHDIM
LN_EPS = 1e-5
LANES = 128
ROW_TILE_TARGET = 512  # packed rows per grid step: ~1.5 MiB of double-buffered
                       # VMEM at f32 -> fits v5e/v6e (128 MiB) and v7x (64 MiB)
                       # for any sequence length.


def _hi_lo_bf16(x):
    """Split f32 into two bf16 halves with x ~= hi + lo (error ~2^-16 relative)."""
    hi = x.astype(jnp.bfloat16)
    lo = (x - hi.astype(jnp.float32)).astype(jnp.bfloat16)
    return hi, lo


def _pick_row_tile(t_text_p, t_pair_p, target=ROW_TILE_TARGET):
    """Largest multiple-of-8 tile (<= target) dividing both packed row counts."""
    g = math.gcd(t_text_p, t_pair_p)   # multiple of 8 (asserted in forward())
    best = 8
    for d in range(8, min(g, target) + 1, 8):
        if g % d == 0:
            best = d
    return best


# ----------------------------- fused Pallas kernel ------------------------------
def _fused_kernel(n_text_tiles,
                  text_ref, pair_ref, whi_ref, wlo_ref, b_ref, g_ref, bt_ref,
                  seg_ref, o_ref):
    """Fused (linear+ReLU) -> concat(seq) -> LayerNorm on a lane-packed layout.

    text_ref: (1, TR, 128)    PACK text seq rows packed into the lane axis
    pair_ref: (1, TR, P*D)    PACK pair seq rows packed into the lane axis
    whi/wlo:  (P*D, 128)      hi/lo bf16 halves of block-diag Wv/Ws
    b_ref, g_ref, bt_ref: (1, 128)   bias / gamma / beta tiled PACK times (f32)
    seg_ref:  (128, 128) bf16 block-diag segment matrix with 1/H folded in
    o_ref:    (1, TR, 128)    one row tile of the concatenated, normalized output
    """
    t = pl.program_id(1)
    seg = seg_ref[...]
    gamma = g_ref[...]
    beta = bt_ref[...]

    def seg_mean(x):
        # Per-32-lane-segment mean via the MXU; seg already carries 1/H and is
        # bf16-exact, so a 2-pass hi/lo split of x is ~f32-exact.
        x_hi, x_lo = _hi_lo_bf16(x)
        return (jnp.dot(x_hi, seg, preferred_element_type=jnp.float32)
                + jnp.dot(x_lo, seg, preferred_element_type=jnp.float32))

    def seg_layernorm(x):
        mean = seg_mean(x)
        xc = x - mean
        var = seg_mean(xc * xc)
        return xc * lax.rsqrt(var + LN_EPS) * gamma + beta

    @pl.when(t < n_text_tiles)
    def _():
        xt = text_ref[0].astype(jnp.float32)
        o_ref[0] = seg_layernorm(xt).astype(o_ref.dtype)

    @pl.when(t >= n_text_tiles)
    def _():
        xp = pair_ref[0].astype(jnp.float32)
        xp_hi, xp_lo = _hi_lo_bf16(xp)
        # 3-pass ~f32 matmul (drops only the lo*lo term, ~2^-16 relative).
        yp = jnp.dot(xp_hi, whi_ref[...], preferred_element_type=jnp.float32)
        yp += jnp.dot(xp_lo, whi_ref[...], preferred_element_type=jnp.float32)
        yp += jnp.dot(xp_hi, wlo_ref[...], preferred_element_type=jnp.float32)
        yp = jnp.maximum(yp + b_ref[...], 0.0)
        o_ref[0] = seg_layernorm(yp).astype(o_ref.dtype)


def _fused_forward(text_packed, pair_packed, w_hi, w_lo, b_tile,
                   gamma_tile, beta_tile, seg, tr):
    B, t_text_p, _ = text_packed.shape
    _, t_pair_p, pd = pair_packed.shape
    n_text = t_text_p // tr
    n_pair = t_pair_p // tr
    n_tiles = n_text + n_pair
    t_total_p = t_text_p + t_pair_p

    kernel = functools.partial(_fused_kernel, n_text)

    # Clamped index_maps: on grid steps that do not use an input, its block
    # index equals the neighbouring step's index, so the pipeline skips the
    # redundant DMA -- each text/pair block is fetched exactly once per batch.
    def text_map(b, t):
        return (b, jnp.minimum(t, n_text - 1), 0)

    def pair_map(b, t):
        return (b, jnp.maximum(t - n_text, 0), 0)

    const2 = lambda b, t: (0, 0)

    return pl.pallas_call(
        kernel,
        out_shape=jax.ShapeDtypeStruct((B, t_total_p, LANES), jnp.float32),
        grid_spec=pltpu.PrefetchScalarGridSpec(
            num_scalar_prefetch=0,
            grid=(B, n_tiles),
            in_specs=[
                pl.BlockSpec((1, tr, LANES), text_map),
                pl.BlockSpec((1, tr, pd), pair_map),
                # Parameters: constant block index -> fetched once, VMEM-resident.
                pl.BlockSpec((pd, LANES), const2),
                pl.BlockSpec((pd, LANES), const2),
                pl.BlockSpec((1, LANES), const2),
                pl.BlockSpec((1, LANES), const2),
                pl.BlockSpec((1, LANES), const2),
                pl.BlockSpec((LANES, LANES), const2),
            ],
            out_specs=pl.BlockSpec((1, tr, LANES), lambda b, t: (b, t, 0)),
        ),
        compiler_params=pltpu.CompilerParams(
            dimension_semantics=("parallel", "parallel"),
        ),
    )(text_packed, pair_packed, w_hi, w_lo, b_tile, gamma_tile, beta_tile, seg)


# ------------------------------- module wrapper ---------------------------------
class JointEmbeddingsPallas:
    def __init__(self, hidden_size, dropout_prob, dataset, key):
        assert dataset == "mosi"
        assert hidden_size == TEXTDIM and LANES % hidden_size == 0
        self.VISUALDIM = MOSIVISUALDIM
        self.SPEECHDIM = CMUSPEECHDIM
        self.hidden_size = hidden_size
        self.dropout_prob = dropout_prob   # identity at inference
        self.pack = LANES // hidden_size   # seq rows folded per 128-lane vreg row

        k = jax.random.split(key, 4)
        # Wv: Linear(VISUALDIM -> TEXTDIM); stored (V, H) for x @ W.
        self.Wv_w = 0.02 * jax.random.normal(k[0], (self.VISUALDIM, TEXTDIM), jnp.float32)
        self.Wv_b = 0.02 * jax.random.normal(k[1], (1, TEXTDIM), jnp.float32)
        # Ws: Linear(SPEECHDIM -> TEXTDIM).
        self.Ws_w = 0.02 * jax.random.normal(k[2], (self.SPEECHDIM, TEXTDIM), jnp.float32)
        self.Ws_b = 0.02 * jax.random.normal(k[3], (1, TEXTDIM), jnp.float32)
        # LayerNorm params (PyTorch default init: ones / zeros).
        self.ln_gamma = jnp.ones((1, hidden_size), jnp.float32)
        self.ln_beta = jnp.zeros((1, hidden_size), jnp.float32)
        # TODO(synk): W_cv / W_cs exist in the PyTorch __init__ but are unused by forward.

        # ---- one-time packed-parameter prep (init-time, not per-call work) ------
        p = self.pack
        wv_blk = self._block_diag(self.Wv_w, p)          # (p*V, 128) f32
        ws_blk = self._block_diag(self.Ws_w, p)          # (p*S, 128) f32
        # hi/lo bf16 halves: 3-pass ~f32 matmul in-kernel, half the DMA bytes.
        self.Wv_blk_hi, self.Wv_blk_lo = _hi_lo_bf16(wv_blk)
        self.Ws_blk_hi, self.Ws_blk_lo = _hi_lo_bf16(ws_blk)
        self.Wv_b_tile = jnp.tile(self.Wv_b, (1, p))     # (1, 128)
        self.Ws_b_tile = jnp.tile(self.Ws_b, (1, p))
        self.gamma_tile = jnp.tile(self.ln_gamma, (1, p))
        self.beta_tile = jnp.tile(self.ln_beta, (1, p))
        # Block-diagonal segment matrix (H-wide blocks) with 1/H folded in,
        # stored bf16 (1/32 and 0 are exactly representable): per-segment
        # LayerNorm means via 2 bf16 MXU passes, no extra VPU multiply.
        lane = jnp.arange(LANES, dtype=jnp.int32)
        same_seg = lane[:, None] // hidden_size == lane[None, :] // hidden_size
        self.seg = jnp.where(same_seg, 1.0 / hidden_size, 0.0).astype(jnp.bfloat16)

    @staticmethod
    def _block_diag(w, pack):
        d, h = w.shape
        out = jnp.zeros((pack * d, pack * h), w.dtype)
        for i in range(pack):
            out = out.at[i * d:(i + 1) * d, i * h:(i + 1) * h].set(w)
        return out

    def forward(self, input_embs, pair_ids):
        assert input_embs is not None, "You miss input_embs"
        assert pair_ids is not None, "You miss pair_ids"
        B, S_text, H = input_embs.shape
        Bp, S_pair, D = pair_ids.shape
        assert B == Bp and H == self.hidden_size
        p = self.pack
        # 8-sublane-aligned packed row counts => every output store is a full,
        # unmasked lane-dense block and row tiles never straddle (8,128) tiles.
        # TODO(synk): pad-and-slice fallback for seq lengths not multiple of 8*pack.
        assert S_text % (8 * p) == 0 and S_pair % (8 * p) == 0, \
            "seq lengths must be multiples of 8 * (128 // hidden)"

        if D == self.VISUALDIM:
            w_hi, w_lo, b_tile = self.Wv_blk_hi, self.Wv_blk_lo, self.Wv_b_tile
        elif D == self.SPEECHDIM:
            w_hi, w_lo, b_tile = self.Ws_blk_hi, self.Ws_blk_lo, self.Ws_b_tile
        else:
            raise Exception("Wrong Dimension")

        # Free contiguous reshapes: fold `pack` consecutive seq rows into lanes.
        # No dtype casts, no pads and no concat in the wrapper.
        text_packed = input_embs.reshape(B, S_text // p, p * H)
        pair_packed = pair_ids.reshape(B, S_pair // p, p * D)
        tr = _pick_row_tile(S_text // p, S_pair // p)

        out = _fused_forward(text_packed, pair_packed, w_hi, w_lo, b_tile,
                             self.gamma_tile, self.beta_tile, self.seg, tr)
        # Free reshape back to (B, S_text + S_pair, H) -- the in-kernel row
        # ordering (text tiles then pair tiles per batch) IS the seq concat.
        # TODO(synk): training-mode dropout not implemented (inference identity).
        return out.reshape(B, S_text + S_pair, H)


# ------------------------------------ main ---------------------------------------
if __name__ == "__main__":
    key = jax.random.PRNGKey(0)
    k_mod, k_x, k_p = jax.random.split(key, 3)

    B, S_text, S_pair = 2, 32, 32
    module = JointEmbeddingsPallas(hidden_size=TEXTDIM, dropout_prob=0.1,
                                   dataset="mosi", key=k_mod)

    input_embs = jax.random.normal(k_x, (B, S_text, TEXTDIM), jnp.float32)
    pair_ids = jax.random.normal(k_p, (B, S_pair, MOSIVISUALDIM), jnp.float32)

    out = module.forward(input_embs, pair_ids)
    jax.block_until_ready(out)

    # Cross-check against a pure-JAX reference (exact-f32 matmul precision).
    pair_ref = jnp.maximum(
        jnp.einsum("bsd,dh->bsh", pair_ids, module.Wv_w,
                   precision=lax.Precision.HIGHEST) + module.Wv_b[0], 0.0)
    cat_ref = jnp.concatenate([input_embs, pair_ref], axis=1)
    mu = cat_ref.mean(-1, keepdims=True)
    var = ((cat_ref - mu) ** 2).mean(-1, keepdims=True)
    ref = (cat_ref - mu) * lax.rsqrt(var + LN_EPS) * module.ln_gamma[0] + module.ln_beta[0]

    assert out.shape == (B, S_text + S_pair, TEXTDIM)
    err = float(jnp.max(jnp.abs(out - ref)))
    assert jnp.allclose(out, ref, atol=1e-4, rtol=1e-4), f"max abs err {err}"

    print("KERNEL_OK")
</pallas_src>

<mosaic_0001>
module attributes {stable_mosaic.version = 11 : i64} {
  func.func @_fused_kernel(%arg0: i32, %arg1: i32, %arg2: memref<1x8x128xf32, #tpu.memory_space<vmem>>, %arg3: memref<1x8x80xf32, #tpu.memory_space<vmem>>, %arg4: memref<80x128xbf16, #tpu.memory_space<vmem>>, %arg5: memref<80x128xbf16, #tpu.memory_space<vmem>>, %arg6: memref<1x128xf32, #tpu.memory_space<vmem>>, %arg7: memref<1x128xf32, #tpu.memory_space<vmem>>, %arg8: memref<1x128xf32, #tpu.memory_space<vmem>>, %arg9: memref<128x128xbf16, #tpu.memory_space<vmem>>, %arg10: memref<1x8x128xf32, #tpu.memory_space<vmem>>) attributes {dimension_semantics = [#tpu.dimension_semantics<parallel>, #tpu.dimension_semantics<parallel>], iteration_bounds = array<i64: 2, 2>, scalar_prefetch = 0 : i64, scratch_operands = 0 : i64, tpu.core_type = #tpu.core_type<tc>, window_params = [{transform_indices = @transform_0, window_bounds = array<i64: 1, 8, 128>}, {transform_indices = @transform_1, window_bounds = array<i64: 1, 8, 80>}, {pipeline_mode = #tpu.pipeline_mode<synchronous>, transform_indices = @transform_2, window_bounds = array<i64: 80, 128>}, {pipeline_mode = #tpu.pipeline_mode<synchronous>, transform_indices = @transform_3, window_bounds = array<i64: 80, 128>}, {pipeline_mode = #tpu.pipeline_mode<synchronous>, transform_indices = @transform_4, window_bounds = array<i64: 1, 128>}, {pipeline_mode = #tpu.pipeline_mode<synchronous>, transform_indices = @transform_5, window_bounds = array<i64: 1, 128>}, {pipeline_mode = #tpu.pipeline_mode<synchronous>, transform_indices = @transform_6, window_bounds = array<i64: 1, 128>}, {pipeline_mode = #tpu.pipeline_mode<synchronous>, transform_indices = @transform_7, window_bounds = array<i64: 128, 128>}, {transform_indices = @transform_8, window_bounds = array<i64: 1, 8, 128>}]} {
    %c0 = arith.constant 0 : index
    %c0_0 = arith.constant 0 : index
    %0 = vector.load %arg9[%c0, %c0_0] : memref<128x128xbf16, #tpu.memory_space<vmem>>, vector<128x128xbf16>
    %c0_1 = arith.constant 0 : index
    %c0_2 = arith.constant 0 : index
    %1 = vector.load %arg7[%c0_1, %c0_2] : memref<1x128xf32, #tpu.memory_space<vmem>>, vector<1x128xf32>
    %c0_3 = arith.constant 0 : index
    %c0_4 = arith.constant 0 : index
    %2 = vector.load %arg8[%c0_3, %c0_4] : memref<1x128xf32, #tpu.memory_space<vmem>>, vector<1x128xf32>
    %c1_i32 = arith.constant 1 : i32
    %3 = arith.cmpi slt, %arg1, %c1_i32 : i32
    %4 = arith.extui %3 : i1 to i32
    %c0_i32 = arith.constant 0 : i32
    %5 = arith.cmpi ne, %4, %c0_i32 : i32
    scf.if %5 {
      %c0_7 = arith.constant 0 : index
      %c0_8 = arith.constant 0 : index
      %c0_9 = arith.constant 0 : index
      %9 = vector.load %arg2[%c0_7, %c0_8, %c0_9] : memref<1x8x128xf32, #tpu.memory_space<vmem>>, vector<1x8x128xf32>
      %10 = vector.shape_cast %9 : vector<1x8x128xf32> to vector<8x128xf32>
      %11 = arith.truncf %10 : vector<8x128xf32> to vector<8x128xbf16>
      %12 = arith.extf %11 : vector<8x128xbf16> to vector<8x128xf32>
      %13 = arith.subf %10, %12 : vector<8x128xf32>
      %14 = arith.truncf %13 : vector<8x128xf32> to vector<8x128xbf16>
      %cst = arith.constant dense<0.000000e+00> : vector<8x128xf32>
      %15 = tpu.matmul %11, %0, %cst {dimension_numbers = #tpu.dot_dimension_numbers<[1], [0], [0], [1], [0, 0, 1, 1], [], []>} : vector<8x128xbf16>, vector<128x128xbf16>, vector<8x128xf32> -> vector<8x128xf32>
      %cst_10 = arith.constant dense<0.000000e+00> : vector<8x128xf32>
      %16 = tpu.matmul %14, %0, %cst_10 {dimension_numbers = #tpu.dot_dimension_numbers<[1], [0], [0], [1], [0, 0, 1, 1], [], []>} : vector<8x128xbf16>, vector<128x128xbf16>, vector<8x128xf32> -> vector<8x128xf32>
      %17 = arith.addf %15, %16 : vector<8x128xf32>
      %18 = arith.subf %10, %17 : vector<8x128xf32>
      %19 = arith.mulf %18, %18 : vector<8x128xf32>
      %20 = arith.truncf %19 : vector<8x128xf32> to vector<8x128xbf16>
      %21 = arith.extf %20 : vector<8x128xbf16> to vector<8x128xf32>
      %22 = arith.subf %19, %21 : vector<8x128xf32>
      %23 = arith.truncf %22 : vector<8x128xf32> to vector<8x128xbf16>
      %cst_11 = arith.constant dense<0.000000e+00> : vector<8x128xf32>
      %24 = tpu.matmul %20, %0, %cst_11 {dimension_numbers = #tpu.dot_dimension_numbers<[1], [0], [0], [1], [0, 0, 1, 1], [], []>} : vector<8x128xbf16>, vector<128x128xbf16>, vector<8x128xf32> -> vector<8x128xf32>
      %cst_12 = arith.constant dense<0.000000e+00> : vector<8x128xf32>
      %25 = tpu.matmul %23, %0, %cst_12 {dimension_numbers = #tpu.dot_dimension_numbers<[1], [0], [0], [1], [0, 0, 1, 1], [], []>} : vector<8x128xbf16>, vector<128x128xbf16>, vector<8x128xf32> -> vector<8x128xf32>
      %26 = arith.addf %24, %25 : vector<8x128xf32>
      %cst_13 = arith.constant 9.99999974E-6 : f32
      %27 = vector.broadcast %cst_13 : f32 to vector<8x128xf32>
      %28 = arith.addf %26, %27 : vector<8x128xf32>
      %29 = math.rsqrt %28 : vector<8x128xf32>
      %30 = arith.mulf %18, %29 : vector<8x128xf32>
      %31 = vector.broadcast %1 : vector<1x128xf32> to vector<8x128xf32>
      %32 = arith.mulf %30, %31 : vector<8x128xf32>
      %33 = vector.broadcast %2 : vector<1x128xf32> to vector<8x128xf32>
      %34 = arith.addf %32, %33 : vector<8x128xf32>
      %c0_14 = arith.constant 0 : index
      %c0_15 = arith.constant 0 : index
      %c0_16 = arith.constant 0 : index
      %35 = vector.load %arg10[%c0_14, %c0_15, %c0_16] : memref<1x8x128xf32, #tpu.memory_space<vmem>>, vector<1x8x128xf32>
      %36 = vector.shape_cast %35 : vector<1x8x128xf32> to vector<8x128xf32>
      %37 = vector.shape_cast %34 : vector<8x128xf32> to vector<1x8x128xf32>
      tpu.vector_store %arg10[%c0_14, %c0_15, %c0_16], %37 {strides = array<i32>} : memref<1x8x128xf32, #tpu.memory_space<vmem>>, vector<1x8x128xf32>,
    } else {
    }
    %c1_i32_5 = arith.constant 1 : i32
    %6 = arith.cmpi sge, %arg1, %c1_i32_5 : i32
    %7 = arith.extui %6 : i1 to i32
    %c0_i32_6 = arith.constant 0 : i32
    %8 = arith.cmpi ne, %7, %c0_i32_6 : i32
    scf.if %8 {
      %c0_7 = arith.constant 0 : index
      %c0_8 = arith.constant 0 : index
      %c0_9 = arith.constant 0 : index
      %9 = vector.load %arg3[%c0_7, %c0_8, %c0_9] : memref<1x8x80xf32, #tpu.memory_space<vmem>>, vector<1x8x80xf32>
      %10 = vector.shape_cast %9 : vector<1x8x80xf32> to vector<8x80xf32>
      %11 = arith.truncf %10 : vector<8x80xf32> to vector<8x80xbf16>
      %12 = arith.extf %11 : vector<8x80xbf16> to vector<8x80xf32>
      %13 = arith.subf %10, %12 : vector<8x80xf32>
      %14 = arith.truncf %13 : vector<8x80xf32> to vector<8x80xbf16>
      %c0_10 = arith.constant 0 : index
      %c0_11 = arith.constant 0 : index
      %15 = vector.load %arg4[%c0_10, %c0_11] : memref<80x128xbf16, #tpu.memory_space<vmem>>, vector<80x128xbf16>
      %cst = arith.constant dense<0.000000e+00> : vector<8x128xf32>
      %16 = tpu.matmul %11, %15, %cst {dimension_numbers = #tpu.dot_dimension_numbers<[1], [0], [0], [1], [0, 0, 1, 1], [], []>} : vector<8x80xbf16>, vector<80x128xbf16>, vector<8x128xf32> -> vector<8x128xf32>
      %c0_12 = arith.constant 0 : index
      %c0_13 = arith.constant 0 : index
      %17 = vector.load %arg4[%c0_12, %c0_13] : memref<80x128xbf16, #tpu.memory_space<vmem>>, vector<80x128xbf16>
      %cst_14 = arith.constant dense<0.000000e+00> : vector<8x128xf32>
      %18 = tpu.matmul %14, %17, %cst_14 {dimension_numbers = #tpu.dot_dimension_numbers<[1], [0], [0], [1], [0, 0, 1, 1], [], []>} : vector<8x80xbf16>, vector<80x128xbf16>, vector<8x128xf32> -> vector<8x128xf32>
      %19 = arith.addf %16, %18 : vector<8x128xf32>
      %c0_15 = arith.constant 0 : index
      %c0_16 = arith.constant 0 : index
      %20 = vector.load %arg5[%c0_15, %c0_16] : memref<80x128xbf16, #tpu.memory_space<vmem>>, vector<80x128xbf16>
      %cst_17 = arith.constant dense<0.000000e+00> : vector<8x128xf32>
      %21 = tpu.matmul %11, %20, %cst_17 {dimension_numbers = #tpu.dot_dimension_numbers<[1], [0], [0], [1], [0, 0, 1, 1], [], []>} : vector<8x80xbf16>, vector<80x128xbf16>, vector<8x128xf32> -> vector<8x128xf32>
      %22 = arith.addf %19, %21 : vector<8x128xf32>
      %c0_18 = arith.constant 0 : index
      %c0_19 = arith.constant 0 : index
      %23 = vector.load %arg6[%c0_18, %c0_19] : memref<1x128xf32, #tpu.memory_space<vmem>>, vector<1x128xf32>
      %24 = vector.broadcast %23 : vector<1x128xf32> to vector<8x128xf32>
      %25 = arith.addf %22, %24 : vector<8x128xf32>
      %cst_20 = arith.constant 0.000000e+00 : f32
      %26 = vector.broadcast %cst_20 : f32 to vector<8x128xf32>
      %27 = arith.maximumf %25, %26 : vector<8x128xf32>
      %28 = arith.truncf %27 : vector<8x128xf32> to vector<8x128xbf16>
      %29 = arith.extf %28 : vector<8x128xbf16> to vector<8x128xf32>
      %30 = arith.subf %27, %29 : vector<8x128xf32>
      %31 = arith.truncf %30 : vector<8x128xf32> to vector<8x128xbf16>
      %cst_21 = arith.constant dense<0.000000e+00> : vector<8x128xf32>
      %32 = tpu.matmul %28, %0, %cst_21 {dimension_numbers = #tpu.dot_dimension_numbers<[1], [0], [0], [1], [0, 0, 1, 1], [], []>} : vector<8x128xbf16>, vector<128x128xbf16>, vector<8x128xf32> -> vector<8x128xf32>
      %cst_22 = arith.constant dense<0.000000e+00> : vector<8x128xf32>
      %33 = tpu.matmul %31, %0, %cst_22 {dimension_numbers = #tpu.dot_dimension_numbers<[1], [0], [0], [1], [0, 0, 1, 1], [], []>} : vector<8x128xbf16>, vector<128x128xbf16>, vector<8x128xf32> -> vector<8x128xf32>
      %34 = arith.addf %32, %33 : vector<8x128xf32>
      %35 = arith.subf %27, %34 : vector<8x128xf32>
      %36 = arith.mulf %35, %35 : vector<8x128xf32>
      %37 = arith.truncf %36 : vector<8x128xf32> to vector<8x128xbf16>
      %38 = arith.extf %37 : vector<8x128xbf16> to vector<8x128xf32>
      %39 = arith.subf %36, %38 : vector<8x128xf32>
      %40 = arith.truncf %39 : vector<8x128xf32> to vector<8x128xbf16>
      %cst_23 = arith.constant dense<0.000000e+00> : vector<8x128xf32>
      %41 = tpu.matmul %37, %0, %cst_23 {dimension_numbers = #tpu.dot_dimension_numbers<[1], [0], [0], [1], [0, 0, 1, 1], [], []>} : vector<8x128xbf16>, vector<128x128xbf16>, vector<8x128xf32> -> vector<8x128xf32>
      %cst_24 = arith.constant dense<0.000000e+00> : vector<8x128xf32>
      %42 = tpu.matmul %40, %0, %cst_24 {dimension_numbers = #tpu.dot_dimension_numbers<[1], [0], [0], [1], [0, 0, 1, 1], [], []>} : vector<8x128xbf16>, vector<128x128xbf16>, vector<8x128xf32> -> vector<8x128xf32>
      %43 = arith.addf %41, %42 : vector<8x128xf32>
      %cst_25 = arith.constant 9.99999974E-6 : f32
      %44 = vector.broadcast %cst_25 : f32 to vector<8x128xf32>
      %45 = arith.addf %43, %44 : vector<8x128xf32>
      %46 = math.rsqrt %45 : vector<8x128xf32>
      %47 = arith.mulf %35, %46 : vector<8x128xf32>
      %48 = vector.broadcast %1 : vector<1x128xf32> to vector<8x128xf32>
      %49 = arith.mulf %47, %48 : vector<8x128xf32>
      %50 = vector.broadcast %2 : vector<1x128xf32> to vector<8x128xf32>
      %51 = arith.addf %49, %50 : vector<8x128xf32>
      %c0_26 = arith.constant 0 : index
      %c0_27 = arith.constant 0 : index
      %c0_28 = arith.constant 0 : index
      %52 = vector.load %arg10[%c0_26, %c0_27, %c0_28] : memref<1x8x128xf32, #tpu.memory_space<vmem>>, vector<1x8x128xf32>
      %53 = vector.shape_cast %52 : vector<1x8x128xf32> to vector<8x128xf32>
      %54 = vector.shape_cast %51 : vector<8x128xf32> to vector<1x8x128xf32>
      tpu.vector_store %arg10[%c0_26, %c0_27, %c0_28], %54 {strides = array<i32>} : memref<1x8x128xf32, #tpu.memory_space<vmem>>, vector<1x8x128xf32>,
    } else {
    }
    return
  }
  func.func @transform_0(%arg0: i32, %arg1: i32) -> (i32, i32, i32) {
    %c0_i32 = arith.constant 0 : i32
    %0 = arith.minsi %arg1, %c0_i32 : i32
    %c0_i32_0 = arith.constant 0 : i32
    %c0_i32_1 = arith.constant 0 : i32
    return %arg0, %0, %c0_i32_0 : i32, i32, i32
  }
  func.func @transform_1(%arg0: i32, %arg1: i32) -> (i32, i32, i32) {
    %c1_i32 = arith.constant 1 : i32
    %0 = arith.subi %arg1, %c1_i32 : i32
    %c0_i32 = arith.constant 0 : i32
    %1 = arith.maxsi %0, %c0_i32 : i32
    %c0_i32_0 = arith.constant 0 : i32
    %c0_i32_1 = arith.constant 0 : i32
    return %arg0, %1, %c0_i32_0 : i32, i32, i32
  }
  func.func @transform_2(%arg0: i32, %arg1: i32) -> (i32, i32) {
    %c0_i32 = arith.constant 0 : i32
    %c0_i32_0 = arith.constant 0 : i32
    %c0_i32_1 = arith.constant 0 : i32
    return %c0_i32, %c0_i32_0 : i32, i32
  }
  func.func @transform_3(%arg0: i32, %arg1: i32) -> (i32, i32) {
    %c0_i32 = arith.constant 0 : i32
    %c0_i32_0 = arith.constant 0 : i32
    %c0_i32_1 = arith.constant 0 : i32
    return %c0_i32, %c0_i32_0 : i32, i32
  }
  func.func @transform_4(%arg0: i32, %arg1: i32) -> (i32, i32) {
    %c0_i32 = arith.constant 0 : i32
    %c0_i32_0 = arith.constant 0 : i32
    %c0_i32_1 = arith.constant 0 : i32
    return %c0_i32, %c0_i32_0 : i32, i32
  }
  func.func @transform_5(%arg0: i32, %arg1: i32) -> (i32, i32) {
    %c0_i32 = arith.constant 0 : i32
    %c0_i32_0 = arith.constant 0 : i32
    %c0_i32_1 = arith.constant 0 : i32
    return %c0_i32, %c0_i32_0 : i32, i32
  }
  func.func @transform_6(%arg0: i32, %arg1: i32) -> (i32, i32) {
    %c0_i32 = arith.constant 0 : i32
    %c0_i32_0 = arith.constant 0 : i32
    %c0_i32_1 = arith.constant 0 : i32
    return %c0_i32, %c0_i32_0 : i32, i32
  }
  func.func @transform_7(%arg0: i32, %arg1: i32) -> (i32, i32) {
    %c0_i32 = arith.constant 0 : i32
    %c0_i32_0 = arith.constant 0 : i32
    %c0_i32_1 = arith.constant 0 : i32
    return %c0_i32, %c0_i32_0 : i32, i32
  }
  func.func @transform_8(%arg0: i32, %arg1: i32) -> (i32, i32, i32) {
    %c0_i32 = arith.constant 0 : i32
    %c0_i32_0 = arith.constant 0 : i32
    return %arg0, %arg1, %c0_i32 : i32, i32, i32
  }
}

</mosaic_0001>

<llo_original>
// kernel: tpu_custom_call.1
$region0: #{tpu_custom_call.1}
  #allocation0 [shape = 'u32[]', space=smem, size = 0x4, offset = 0x4, fixed_abs, tag = 'smem constant byte address 0x4 - core index']
  #allocation1 [shape = 'u32[144,128]{1,0:T(1,128)}', space=vmem, size = 0x12000, scoped, tag = 'internal scratch']
  %s0 = inlined_call_operand.hbm [shape: f32[2,8,128], index: 0, kind: input, shape index: {}]
  %s1 = inlined_call_operand.hbm [shape: f32[2,8,80], index: 1, kind: input, shape index: {}]
  %s2 = inlined_call_operand.hbm [shape: bf16[80,128], index: 2, kind: input, shape index: {}]
  %s3 = inlined_call_operand.hbm [shape: bf16[80,128], index: 3, kind: input, shape index: {}]
  %s4 = inlined_call_operand.vmem [shape: f32[1,128], index: 4, kind: input, shape index: {}]
  %s5 = inlined_call_operand.vmem [shape: f32[1,128], index: 5, kind: input, shape index: {}]
  %s6 = inlined_call_operand.vmem [shape: f32[1,128], index: 6, kind: input, shape index: {}]
  %s7 = inlined_call_operand.hbm [shape: bf16[128,128], index: 7, kind: input, shape index: {}]
  %s8 = inlined_call_operand.hbm [shape: f32[2,16,128], index: 8, kind: output, shape index: {}]
  %s9 = sld [smem:[#allocation0]]
  $region93: #{tpu_custom_call.1} parent=0
    _
  %s11 = ssub.s32 1, %s9
  %s12 = scalar_select 0, %s11, %s9
  $region1: #{tpu_custom_call.1} parent=0
    #allocation2 [shape = 'u8[8192]{0}', space=vmem, size = 0x2000, scoped, tag = 'input window, operand 0']
    #allocation3 [shape = 's32[2]{0}', space=sflag, size = 0x8, scoped, tag = 'scoped memory for tpu_custom_call.1']
    #allocation4 [shape = 's32[2]{0}', space=sflag, size = 0x8, scoped, tag = 'scoped memory for tpu_custom_call.1']
    #allocation5 [shape = 'u8[8192]{0}', space=vmem, size = 0x2000, scoped, tag = 'input window, operand 1']
    #allocation6 [shape = 's32[2]{0}', space=sflag, size = 0x8, scoped, tag = 'scoped memory for tpu_custom_call.1']
    #allocation7 [shape = 'u8[20480]{0}', space=vmem, size = 0x5000, scoped, tag = 'input window, operand 2, single buffered']
    #allocation8 [shape = 'u8[20480]{0}', space=vmem, size = 0x5000, scoped, tag = 'input window, operand 3, single buffered']
    #allocation9 [shape = 's32[1]{0}', space=sflag, size = 0x4, scoped, tag = 'scoped memory for tpu_custom_call.1']
    #allocation10 [shape = 'u8[32768]{0}', space=vmem, size = 0x8000, scoped, tag = 'input window, operand 7, single buffered']
    #allocation11 [shape = 'u8[8192]{0}', space=vmem, size = 0x2000, scoped, tag = 'output window, operand 0']
    %13 = vsyncpa [#allocation3], 0
    %s14 = scalar_lea.sflag [#allocation3], 1
    %15 = vsyncpa %s14, 0
    %16 = vsyncpa [#allocation6], 0
    %s17 = scalar_lea.sflag [#allocation6], 1
    %18 = vsyncpa %s17, 0
    %19 = vsyncpa [#allocation9], 0
    %20 = vsyncpa [#allocation4], 0
    %s21 = scalar_lea.sflag [#allocation4], 1
    %22 = vsyncpa %s21, 0
    loop: start=0, step=1, limit=6
    $region2: #{tpu_custom_call.1} parent=1 // loop_pre_header
      _
    $region3: #{tpu_custom_call.1} parent=1 // loop_header
      %s24 = sphi 0, %s28
      %p25 = scmp.ge.s32.totalorder %s24, 6
      %s31 = sphi 0, %s43
      %s32 = sphi 0, %s39
      %s33 = sphi 0, %s31
      %s34 = sphi 0, %s32
      %s35 = sphi 0, %s33
      %s36 = sphi 0, %s34
      %s52 = sphi 0, %s54
      %s55 = sphi 0, %s52
      %s56 = sphi 0, %s55
      %s72 = sphi 0, %s56
      %s86 = sphi 0, %s88
      %s89 = sphi 0, %s86
      %s90 = sphi 0, %s89
      %s106 = sphi 0, %s90
      %s110 = sphi 0, %s110
      %s112 = sphi 0, %s110
      %s113 = sphi 0, %s112
      %s127 = sphi 0, %s113
      %s131 = sphi 0, %s131
      %s133 = sphi 0, %s131
      %s134 = sphi 0, %s133
      %s148 = sphi 0, %s134
      %s152 = sphi 0, %s152
      %s154 = sphi 0, %s152
      %s155 = sphi 0, %s154
      %s169 = sphi 0, %s155
      %s173 = sphi 0, %s173
      %s175 = sphi 0, %s173
      %s176 = sphi 0, %s175
      %s190 = sphi 0, %s176
      %s194 = sphi 0, %s194
      %s196 = sphi 0, %s194
      %s197 = sphi 0, %s196
      %s211 = sphi 0, %s197
      %s215 = sphi 0, %s215
      %s217 = sphi 0, %s215
      %s218 = sphi 0, %s217
      %s232 = sphi 0, %s218
      %s240 = sphi 0, %s242
      %s243 = sphi 0, %s240
      %s244 = sphi 0, %s243
      %s260 = sphi 0, %s244
    $region4: #{tpu_custom_call.1} parent=1 // loop_header_branch
      %27 = sbr.rel (%p25) target = $region8
    $region5: #{tpu_custom_call.1} parent=1 // loop_body
      %s29 = ssub.s32 %s24, 1
      %s30 = ssub.s32 %s24, 2
      %s37 = sadd.s32 1, %s32
      %p38 = scmp.ge.s32.totalorder %s37, 2
      %s39 = scalar_select %p38, 0, %s37
      %s40 = sadd.s32 1, %s31
      %s41 = scalar_select %p38, %s40, %s31
      %p42 = scmp.ge.s32.totalorder %s41, 2
      %s43 = scalar_select %p42, 0, %s41
      %p44 = scmp.lt.s32.totalorder %s32, 0
      %s45 = scalar_select %p44, %s32, 0
      %p46 = scmp.lt.s32.totalorder %s39, 0
      %s47 = scalar_select %p46, %s39, 0
      %s48 = ssub.s32 %s31, %s43
      %s49 = ssub.s32 %s45, %s47
      %s50 = sor.u32 %s48, %s49
      %p51 = scmp.eq.s32.totalorder %s50, 0
      %s53 = sadd.s32 %s52, 1
      %s54 = scalar_select %p51, %s52, %s53
      %p57 = pneg %p51
      %p58 = scmp.eq.s32.totalorder %s24, 3
      %p59 = por %p57, %p58
      %p60 = scmp.ne.s32.totalorder %s52, %s55
      %p61 = scmp.eq.s32.totalorder %s24, 0
      %p62 = por %p60, %p61
      %p63 = scmp.ne.s32.totalorder %s52, %s55
      %p64 = scmp.eq.s32.totalorder %s29, 3
      %p65 = por %p63, %p64
      %p66 = scmp.ne.s32.totalorder %s55, %s56
      %p67 = scmp.eq.s32.totalorder %s29, 0
      %p68 = por %p66, %p67
      %p69 = scmp.ne.s32.totalorder %s55, %s56
      %p70 = scmp.eq.s32.totalorder %s30, 3
      %p71 = por %p69, %p70
      %p73 = scmp.ne.s32.totalorder %s56, %s72
      %p74 = scmp.eq.s32.totalorder %s30, 0
      %p75 = por %p73, %p74
      %s76 = ssub.s32 %s32, 1
      %p77 = scmp.gt.s32.totalorder %s76, 0
      %s78 = scalar_select %p77, %s76, 0
      %s79 = ssub.s32 %s39, 1
      %p80 = scmp.gt.s32.totalorder %s79, 0
      %s81 = scalar_select %p80, %s79, 0
      %s82 = ssub.s32 %s31, %s43
      %s83 = ssub.s32 %s78, %s81
      %s84 = sor.u32 %s82, %s83
      %p85 = scmp.eq.s32.totalorder %s84, 0
      %s87 = sadd.s32 %s86, 1
      %s88 = scalar_select %p85, %s86, %s87
      %p91 = pneg %p85
      %p92 = scmp.eq.s32.totalorder %s24, 3
      %p93 = por %p91, %p92
      %p94 = scmp.ne.s32.totalorder %s86, %s89
      %p95 = scmp.eq.s32.totalorder %s24, 0
      %p96 = por %p94, %p95
      %p97 = scmp.ne.s32.totalorder %s86, %s89
      %p98 = scmp.eq.s32.totalorder %s29, 3
      %p99 = por %p97, %p98
      %p100 = scmp.ne.s32.totalorder %s89, %s90
      %p101 = scmp.eq.s32.totalorder %s29, 0
      %p102 = por %p100, %p101
      %p103 = scmp.ne.s32.totalorder %s89, %s90
      %p104 = scmp.eq.s32.totalorder %s30, 3
      %p105 = por %p103, %p104
      %p107 = scmp.ne.s32.totalorder %s90, %s106
      %p108 = scmp.eq.s32.totalorder %s30, 0
      %p109 = por %p107, %p108
      %s111 = sadd.s32 %s110, 1
      %p114 = scmp.eq.s32.totalorder %s24, 3
      %p115 = scmp.ne.s32.totalorder %s110, %s112
      %p116 = scmp.eq.s32.totalorder %s24, 0
      %p117 = por %p115, %p116
      %p118 = scmp.ne.s32.totalorder %s110, %s112
      %p119 = scmp.eq.s32.totalorder %s29, 3
      %p120 = por %p118, %p119
      %p121 = scmp.ne.s32.totalorder %s112, %s113
      %p122 = scmp.eq.s32.totalorder %s29, 0
      %p123 = por %p121, %p122
      %p124 = scmp.ne.s32.totalorder %s112, %s113
      %p125 = scmp.eq.s32.totalorder %s30, 3
      %p126 = por %p124, %p125
      %p128 = scmp.ne.s32.totalorder %s113, %s127
      %p129 = scmp.eq.s32.totalorder %s30, 0
      %p130 = por %p128, %p129
      %s132 = sadd.s32 %s131, 1
      %p135 = scmp.eq.s32.totalorder %s24, 3
      %p136 = scmp.ne.s32.totalorder %s131, %s133
      %p137 = scmp.eq.s32.totalorder %s24, 0
      %p138 = por %p136, %p137
      %p139 = scmp.ne.s32.totalorder %s131, %s133
      %p140 = scmp.eq.s32.totalorder %s29, 3
      %p141 = por %p139, %p140
      %p142 = scmp.ne.s32.totalorder %s133, %s134
      %p143 = scmp.eq.s32.totalorder %s29, 0
      %p144 = por %p142, %p143
      %p145 = scmp.ne.s32.totalorder %s133, %s134
      %p146 = scmp.eq.s32.totalorder %s30, 3
      %p147 = por %p145, %p146
      %p149 = scmp.ne.s32.totalorder %s134, %s148
      %p150 = scmp.eq.s32.totalorder %s30, 0
      %p151 = por %p149, %p150
      %s153 = sadd.s32 %s152, 1
      %p156 = scmp.eq.s32.totalorder %s24, 3
      %p157 = scmp.ne.s32.totalorder %s152, %s154
      %p158 = scmp.eq.s32.totalorder %s24, 0
      %p159 = por %p157, %p158
      %p160 = scmp.ne.s32.totalorder %s152, %s154
      %p161 = scmp.eq.s32.totalorder %s29, 3
      %p162 = por %p160, %p161
      %p163 = scmp.ne.s32.totalorder %s154, %s155
      %p164 = scmp.eq.s32.totalorder %s29, 0
      %p165 = por %p163, %p164
      %p166 = scmp.ne.s32.totalorder %s154, %s155
      %p167 = scmp.eq.s32.totalorder %s30, 3
      %p168 = por %p166, %p167
      %p170 = scmp.ne.s32.totalorder %s155, %s169
      %p171 = scmp.eq.s32.totalorder %s30, 0
      %p172 = por %p170, %p171
      %s174 = sadd.s32 %s173, 1
      %p177 = scmp.eq.s32.totalorder %s24, 3
      %p178 = scmp.ne.s32.totalorder %s173, %s175
      %p179 = scmp.eq.s32.totalorder %s24, 0
      %p180 = por %p178, %p179
      %p181 = scmp.ne.s32.totalorder %s173, %s175
      %p182 = scmp.eq.s32.totalorder %s29, 3
      %p183 = por %p181, %p182
      %p184 = scmp.ne.s32.totalorder %s175, %s176
      %p185 = scmp.eq.s32.totalorder %s29, 0
      %p186 = por %p184, %p185
      %p187 = scmp.ne.s32.totalorder %s175, %s176
      %p188 = scmp.eq.s32.totalorder %s30, 3
      %p189 = por %p187, %p188
      %p191 = scmp.ne.s32.totalorder %s176, %s190
      %p192 = scmp.eq.s32.totalorder %s30, 0
      %p193 = por %p191, %p192
      %s195 = sadd.s32 %s194, 1
      %p198 = scmp.eq.s32.totalorder %s24, 3
      %p199 = scmp.ne.s32.totalorder %s194, %s196
      %p200 = scmp.eq.s32.totalorder %s24, 0
      %p201 = por %p199, %p200
      %p202 = scmp.ne.s32.totalorder %s194, %s196
      %p203 = scmp.eq.s32.totalorder %s29, 3
      %p204 = por %p202, %p203
      %p205 = scmp.ne.s32.totalorder %s196, %s197
      %p206 = scmp.eq.s32.totalorder %s29, 0
      %p207 = por %p205, %p206
      %p208 = scmp.ne.s32.totalorder %s196, %s197
      %p209 = scmp.eq.s32.totalorder %s30, 3
      %p210 = por %p208, %p209
      %p212 = scmp.ne.s32.totalorder %s197, %s211
      %p213 = scmp.eq.s32.totalorder %s30, 0
      %p214 = por %p212, %p213
      %s216 = sadd.s32 %s215, 1
      %p219 = scmp.eq.s32.totalorder %s24, 3
      %p220 = scmp.ne.s32.totalorder %s215, %s217
      %p221 = scmp.eq.s32.totalorder %s24, 0
      %p222 = por %p220, %p221
      %p223 = scmp.ne.s32.totalorder %s215, %s217
      %p224 = scmp.eq.s32.totalorder %s29, 3
      %p225 = por %p223, %p224
      %p226 = scmp.ne.s32.totalorder %s217, %s218
      %p227 = scmp.eq.s32.totalorder %s29, 0
      %p228 = por %p226, %p227
      %p229 = scmp.ne.s32.totalorder %s217, %s218
      %p230 = scmp.eq.s32.totalorder %s30, 3
      %p231 = por %p229, %p230
      %p233 = scmp.ne.s32.totalorder %s218, %s232
      %p234 = scmp.eq.s32.totalorder %s30, 0
      %p235 = por %p233, %p234
      %s236 = ssub.s32 %s31, %s43
      %s237 = ssub.s32 %s32, %s39
      %s238 = sor.u32 %s236, %s237
      %p239 = scmp.eq.s32.totalorder %s238, 0
      %s241 = sadd.s32 %s240, 1
      %s242 = scalar_select %p239, %s240, %s241
      %p245 = pneg %p239
      %p246 = scmp.eq.s32.totalorder %s24, 3
      %p247 = por %p245, %p246
      %p248 = scmp.ne.s32.totalorder %s240, %s243
      %p249 = scmp.eq.s32.totalorder %s24, 0
      %p250 = por %p248, %p249
      %p251 = scmp.ne.s32.totalorder %s240, %s243
      %p252 = scmp.eq.s32.totalorder %s29, 3
      %p253 = por %p251, %p252
      %p254 = scmp.ne.s32.totalorder %s243, %s244
      %p255 = scmp.eq.s32.totalorder %s29, 0
      %p256 = por %p254, %p255
      %p257 = scmp.ne.s32.totalorder %s243, %s244
      %p258 = scmp.eq.s32.totalorder %s30, 3
      %p259 = por %p257, %p258
      %p261 = scmp.ne.s32.totalorder %s244, %s260
      %p262 = scmp.eq.s32.totalorder %s30, 0
      %p263 = por %p261, %p262
      %p264 = scmp.le.s32.totalorder 1, %s24
      %p265 = scmp.lt.s32.totalorder %s24, 5
      %p266 = pnand %p264, %p265
      %p267 = pneg %p266
      // Predicated region
      $region9: #{tpu_custom_call.1} parent=5 // pred_check
        _
      $region10: #{tpu_custom_call.1} parent=5 // pred_check_branch
        %269 = sbr.rel (%p266) target = $region12
      $region11: #{tpu_custom_call.1} parent=5 // pred_region
        %s270 = ssub.s32 %s24, 1
        // Predicated region
        $region13: #{tpu_custom_call.1} parent=11 // pred_check
          %p271 = pneg %p123
        $region14: #{tpu_custom_call.1} parent=11 // pred_check_branch
          %273 = sbr.rel (%p271) target = $region16
        $region15: #{tpu_custom_call.1} parent=11 // pred_region
          %s275 = ssub.s32 640, 640
          %276 = vsyncadd [#allocation6], %s275
          %s277 = sshll.u32 [#allocation7], 4
          %s278 = int_to_ptr.vmem [resolvable:$true] %s277
          %283 = dma.hbm_to_vmem [thread:$0]  %s2, 640, %s278, [#allocation6], 64, 64, 4
        $region16: #{tpu_custom_call.1} parent=11 // pred_fallthru
          _
        // Predicated region
        $region17: #{tpu_custom_call.1} parent=11 // pred_check
          %p284 = pneg %p144
        $region18: #{tpu_custom_call.1} parent=11 // pred_check_branch
          %286 = sbr.rel (%p284) target = $region20
        $region19: #{tpu_custom_call.1} parent=11 // pred_region
          %s288 = ssub.s32 640, 640
          %289 = vsyncadd [#allocation9], %s288
          %s290 = sshll.u32 [#allocation8], 4
          %s291 = int_to_ptr.vmem [resolvable:$true] %s290
          %296 = dma.hbm_to_vmem [thread:$0]  %s3, 640, %s291, [#allocation9], 64, 64, 4
        $region20: #{tpu_custom_call.1} parent=11 // pred_fallthru
          _
        // Predicated region
        $region21: #{tpu_custom_call.1} parent=11 // pred_check
          %p297 = pneg %p165
        $region22: #{tpu_custom_call.1} parent=11 // pred_check_branch
          %299 = sbr.rel (%p297) target = $region24
        $region23: #{tpu_custom_call.1} parent=11 // pred_region
          _
        $region24: #{tpu_custom_call.1} parent=11 // pred_fallthru
          _
        // Predicated region
        $region25: #{tpu_custom_call.1} parent=11 // pred_check
          %p300 = pneg %p186
        $region26: #{tpu_custom_call.1} parent=11 // pred_check_branch
          %302 = sbr.rel (%p300) target = $region28
        $region27: #{tpu_custom_call.1} parent=11 // pred_region
          _
        $region28: #{tpu_custom_call.1} parent=11 // pred_fallthru
          _
        // Predicated region
        $region29: #{tpu_custom_call.1} parent=11 // pred_check
          %p303 = pneg %p207
        $region30: #{tpu_custom_call.1} parent=11 // pred_check_branch
          %305 = sbr.rel (%p303) target = $region32
        $region31: #{tpu_custom_call.1} parent=11 // pred_region
          _
        $region32: #{tpu_custom_call.1} parent=11 // pred_fallthru
          _
        // Predicated region
        $region33: #{tpu_custom_call.1} parent=11 // pred_check
          %p306 = pneg %p228
        $region34: #{tpu_custom_call.1} parent=11 // pred_check_branch
          %308 = sbr.rel (%p306) target = $region36
        $region35: #{tpu_custom_call.1} parent=11 // pred_region
          %s310 = ssub.s32 1024, 1024
          %311 = vsyncadd [#allocation9], %s310
          %s312 = sshll.u32 [#allocation10], 4
          %s313 = int_to_ptr.vmem [resolvable:$true] %s312
          %318 = dma.hbm_to_vmem [thread:$0]  %s7, 1024, %s313, [#allocation9], 64, 64, 4
        $region36: #{tpu_custom_call.1} parent=11 // pred_fallthru
          _
      $region12: #{tpu_custom_call.1} parent=5 // pred_fallthru
        _
      %p319 = scmp.lt.s32.totalorder %s24, 4
      // Predicated region
      $region37: #{tpu_custom_call.1} parent=5 // pred_check
        %p320 = pneg %p319
      $region38: #{tpu_custom_call.1} parent=5 // pred_check_branch
        %322 = sbr.rel (%p320) target = $region40
      $region39: #{tpu_custom_call.1} parent=5 // pred_region
        // Predicated region
        $region41: #{tpu_custom_call.1} parent=39 // pred_check
          %p323 = pneg %p62
        $region42: #{tpu_custom_call.1} parent=39 // pred_check_branch
          %325 = sbr.rel (%p323) target = $region44
        $region43: #{tpu_custom_call.1} parent=39 // pred_region
          %s326 = sand.u32 %s52, 1
          %s327 = scalar_lea.sflag [#allocation3], %s326
          %s328 = sand.u32 %s52, 1
          %s329 = smul.addr %s328, 8
          %s330 = scalar_lea.vmem [#allocation2], %s329
          %p331 = scmp.lt.s32.totalorder %s32, 0
          %s332 = scalar_select %p331, %s32, 0
          %s334 = ssub.s32 128, 128
          %335 = vsyncadd %s327, %s334
          %s336 = sadd.s32 %s332, %s31
          %s337 = smul.addr %s336, 128
          %s338 = scalar_lea.hbm %s0, %s337
          %s340 = sshll.u32 %s330, 4
          %s341 = int_to_ptr.vmem [resolvable:$true] %s340
          %343 = dma.hbm_to_vmem [thread:$0]  %s338, 128, %s341, %s327
        $region44: #{tpu_custom_call.1} parent=39 // pred_fallthru
          _
        // Predicated region
        $region45: #{tpu_custom_call.1} parent=39 // pred_check
          %p344 = pneg %p96
        $region46: #{tpu_custom_call.1} parent=39 // pred_check_branch
          %346 = sbr.rel (%p344) target = $region48
        $region47: #{tpu_custom_call.1} parent=39 // pred_region
          %s347 = sand.u32 %s24, 1
          %s348 = scalar_lea.sflag [#allocation6], %s347
          %s349 = sand.u32 %s86, 1
          %s350 = smul.addr %s349, 8
          %s351 = scalar_lea.vmem [#allocation5], %s350
          %s352 = ssub.s32 %s32, 1
          %p353 = scmp.gt.s32.totalorder %s352, 0
          %s354 = scalar_select %p353, %s352, 0
          %s356 = ssub.s32 128, 128
          %357 = vsyncadd %s348, %s356
          %s358 = sadd.s32 %s354, %s31
          %s359 = smul.addr %s358, 128
          %s360 = scalar_lea.hbm %s1, %s359
          %s362 = sshll.u32 %s351, 4
          %s363 = int_to_ptr.vmem [resolvable:$true] %s362
          %365 = dma.hbm_to_vmem [thread:$0]  %s360, 128, %s363, %s348
        $region48: #{tpu_custom_call.1} parent=39 // pred_fallthru
          _
      $region40: #{tpu_custom_call.1} parent=5 // pred_fallthru
        _
      %p366 = scmp.le.s32.totalorder 1, %s24
      %p367 = scmp.lt.s32.totalorder %s24, 5
      %p368 = pnand %p366, %p367
      %p369 = pneg %p368
      // Predicated region
      $region49: #{tpu_custom_call.1} parent=5 // pred_check
        _
      $region50: #{tpu_custom_call.1} parent=5 // pred_check_branch
        %371 = sbr.rel (%p368) target = $region52
      $region51: #{tpu_custom_call.1} parent=5 // pred_region
        %s372 = ssub.s32 %s24, 1
        %s373 = sand.u32 %s55, 1
        %s374 = scalar_lea.sflag [#allocation3], %s373
        %s375 = sand.u32 %s55, 1
        %s376 = smul.addr %s375, 8
        %s377 = scalar_lea.vmem [#allocation2], %s376
        // Predicated region
        $region53: #{tpu_custom_call.1} parent=51 // pred_check
          %p378 = pneg %p68
        $region54: #{tpu_custom_call.1} parent=51 // pred_check_branch
          %380 = sbr.rel (%p378) target = $region56
        $region55: #{tpu_custom_call.1} parent=51 // pred_region
          %381 = dma.done %s374, 128
        $region56: #{tpu_custom_call.1} parent=51 // pred_fallthru
          _
        %s382 = sand.u32 %s29, 1
        %s383 = scalar_lea.sflag [#allocation6], %s382
        %s384 = sand.u32 %s89, 1
        %s385 = smul.addr %s384, 8
        %s386 = scalar_lea.vmem [#allocation5], %s385
        // Predicated region
        $region57: #{tpu_custom_call.1} parent=51 // pred_check
          %p387 = pneg %p102
        $region58: #{tpu_custom_call.1} parent=51 // pred_check_branch
          %389 = sbr.rel (%p387) target = $region60
        $region59: #{tpu_custom_call.1} parent=51 // pred_region
          %390 = dma.done %s383, 128
        $region60: #{tpu_custom_call.1} parent=51 // pred_fallthru
          _
        // Predicated region
        $region61: #{tpu_custom_call.1} parent=51 // pred_check
          %p391 = pneg %p123
        $region62: #{tpu_custom_call.1} parent=51 // pred_check_branch
          %393 = sbr.rel (%p391) target = $region64
        $region63: #{tpu_custom_call.1} parent=51 // pred_region
          %394 = dma.done [#allocation6], 640
        $region64: #{tpu_custom_call.1} parent=51 // pred_fallthru
          _
        // Predicated region
        $region65: #{tpu_custom_call.1} parent=51 // pred_check
          %p395 = pneg %p144
        $region66: #{tpu_custom_call.1} parent=51 // pred_check_branch
          %397 = sbr.rel (%p395) target = $region68
        $region67: #{tpu_custom_call.1} parent=51 // pred_region
          %398 = dma.done [#allocation9], 640
        $region68: #{tpu_custom_call.1} parent=51 // pred_fallthru
          _
        // Predicated region
        $region69: #{tpu_custom_call.1} parent=51 // pred_check
          %p399 = pneg %p228
        $region70: #{tpu_custom_call.1} parent=51 // pred_check_branch
          %401 = sbr.rel (%p399) target = $region72
        $region71: #{tpu_custom_call.1} parent=51 // pred_region
          %402 = dma.done [#allocation9], 1024
        $region72: #{tpu_custom_call.1} parent=51 // pred_fallthru
          _
        %s403 = sand.u32 %s55, 1
        %s404 = scalar_lea.sflag [#allocation3], %s403
        %s405 = sand.u32 %s55, 1
        %s406 = smul.addr %s405, 8
        %s407 = scalar_lea.vmem [#allocation2], %s406
        %p408 = pneg %p68
        %p409 = pneg %p65
        %s410 = sand.u32 %s29, 1
        %s411 = scalar_lea.sflag [#allocation6], %s410
        %s412 = sand.u32 %s89, 1
        %s413 = smul.addr %s412, 8
        %s414 = scalar_lea.vmem [#allocation5], %s413
        %p415 = pneg %p102
        %p416 = pneg %p99
        %p417 = pneg %p123
        %p418 = pneg %p120
        %p419 = pneg %p144
        %p420 = pneg %p141
        %p421 = pneg %p165
        %p422 = pneg %p162
        %p423 = pneg %p186
        %p424 = pneg %p183
        %p425 = pneg %p207
        %p426 = pneg %p204
        %p427 = pneg %p228
        %p428 = pneg %p225
        %p429 = pneg %p256
        %p430 = pneg %p253
        %s431 = sand.u32 %s243, 1
        %s432 = scalar_lea.sflag [#allocation4], %s431
        %s433 = sand.u32 %s243, 1
        %s434 = smul.addr %s433, 8
        %s435 = scalar_lea.vmem [#allocation11], %s434
        %p436 = scmp.lt.s32.totalorder %s34, 0
        %s437 = scalar_select %p436, %s34, 0
        %s438 = ssub.s32 %s34, 1
        %p439 = scmp.gt.s32.totalorder %s438, 0
        %s440 = scalar_select %p439, %s438, 0
        %v442 = vld [vmem:[#allocation10] sm:$0xf]
        %v443 = vld [vmem:[#allocation10 + $0x4] sm:$0xf]
        %v444 = vld [vmem:[#allocation10 + $0x8] sm:$0xf]
        %v445 = vld [vmem:[#allocation10 + $0xc] sm:$0xf]
        %v446 = vld [vmem:[#allocation10 + $0x10] sm:$0xf]
        %v447 = vld [vmem:[#allocation10 + $0x14] sm:$0xf]
        %v448 = vld [vmem:[#allocation10 + $0x18] sm:$0xf]
        %v449 = vld [vmem:[#allocation10 + $0x1c] sm:$0xf]
        %v450 = vld [vmem:[#allocation10 + $0x20] sm:$0xf]
        %v451 = vld [vmem:[#allocation10 + $0x24] sm:$0xf]
        %v452 = vld [vmem:[#allocation10 + $0x28] sm:$0xf]
        %v453 = vld [vmem:[#allocation10 + $0x2c] sm:$0xf]
        %v454 = vld [vmem:[#allocation10 + $0x30] sm:$0xf]
        %v455 = vld [vmem:[#allocation10 + $0x34] sm:$0xf]
        %v456 = vld [vmem:[#allocation10 + $0x38] sm:$0xf]
        %v457 = vld [vmem:[#allocation10 + $0x3c] sm:$0xf]
        %v458 = vld [vmem:[%s5] sm:$0x1]
        %v459 = vld [vmem:[%s6] sm:$0x1]
        %p460 = scmp.lt.s32.totalorder %s34, 1
        // Predicated region
        $region73: #{tpu_custom_call.1} parent=51 // pred_check
          %p461 = pneg %p460
        $region74: #{tpu_custom_call.1} parent=51 // pred_check_branch
          %463 = sbr.rel (%p461) target = $region76
        $region75: #{tpu_custom_call.1} parent=51 // pred_region
          %v464 = vld [vmem:[%s377] sm:$0xff]
          %v465 = vpack.c.bf16 %v464, %v464
          %v466 = vunpack.c.l.bf16 %v465
          %v467 = vsub.f32 %v464, %v466
          %v468 = vpack.c.bf16 %v467, %v467
          %v485 = vunpack.c.l.b16 %v442
          %v486 = vunpack.c.l.b16 %v443
          %v487 = vunpack.c.l.b16 %v444
          %v488 = vunpack.c.l.b16 %v445
          %v489 = vunpack.c.l.b16 %v446
          %v490 = vunpack.c.l.b16 %v447
          %v491 = vunpack.c.l.b16 %v448
          %v492 = vunpack.c.l.b16 %v449
          %v493 = vunpack.c.l.b16 %v450
          %v494 = vunpack.c.l.b16 %v451
          %v495 = vunpack.c.l.b16 %v452
          %v496 = vunpack.c.l.b16 %v453
          %v497 = vunpack.c.l.b16 %v454
          %v498 = vunpack.c.l.b16 %v455
          %v499 = vunpack.c.l.b16 %v456
          %v500 = vunpack.c.l.b16 %v457
          %v501 = vpack.c.b16 %v486, %v485
          %v502 = vpack.c.b16 %v488, %v487
          %v503 = vpack.c.b16 %v490, %v489
          %v504 = vpack.c.b16 %v492, %v491
          %v505 = vpack.c.b16 %v494, %v493
          %v506 = vpack.c.b16 %v496, %v495
          %v507 = vpack.c.b16 %v498, %v497
          %v508 = vpack.c.b16 %v500, %v499
          %517 = vmatprep.subr.bf16.mxu0 0
          %518 = vmatpush1.bf16.msra.mxu0 %v508
          %519 = vmatprep.subr.bf16.mxu0 0
          %520 = vmatpush1.bf16.msra.mxu0 %v507
          %521 = vmatprep.subr.bf16.mxu0 0
          %522 = vmatpush1.bf16.msra.mxu0 %v506
          %523 = vmatprep.subr.bf16.mxu0 0
          %524 = vmatpush1.bf16.msra.mxu0 %v505
          %525 = vmatprep.subr.bf16.mxu0 0
          %526 = vmatpush1.bf16.msra.mxu0 %v504
          %527 = vmatprep.subr.bf16.mxu0 0
          %528 = vmatpush1.bf16.msra.mxu0 %v503
          %529 = vmatprep.subr.bf16.mxu0 0
          %530 = vmatpush1.bf16.msra.mxu0 %v502
          %531 = vmatprep.subr.bf16.mxu0 0
          %532 = vmatpush1.bf16.msra.mxu0 %v501
          %533 = vmatprep.subr.bf16.mxu0 0
          %534 = vmatpush2.bf16.msra.mxu0 0
          %535 = vmatprep.subr.bf16.mxu0 0
          %536 = vmatpush2.bf16.msra.mxu0 0
          %537 = vmatprep.subr.bf16.mxu0 0
          %538 = vmatpush2.bf16.msra.mxu0 0
          %539 = vmatprep.subr.bf16.mxu0 0
          %540 = vmatpush2.bf16.msra.mxu0 0
          %541 = vmatprep.subr.bf16.mxu0 0
          %542 = vmatpush2.bf16.msra.mxu0 0
          %543 = vmatprep.subr.bf16.mxu0 0
          %544 = vmatpush2.bf16.msra.mxu0 0
          %545 = vmatprep.subr.bf16.mxu0 0
          %546 = vmatpush2.bf16.msra.mxu0 0
          %547 = vmatprep.subr.bf16.mxu0 0
          %548 = vmatpush2.bf16.msra.mxu0 0
          %549 = vmatprep.mubr.bf16.mxu0 0
          %550 = vmatmul.mubr.bf16.gmra.mxu0 %v468
          %v551 = vpop.f32.mrf.mxu0
          %v552 = vadd.f32 0.0, %v551
          %v553 = vpop.f32.mrf.mxu0
          %v554 = vpop.f32.mrf.mxu0
          %v555 = vpop.f32.mrf.mxu0
          %556 = vdwg.mxu0
          %557 = vmatprep.subr.bf16.mxu0 0
          %558 = vmatpush1.bf16.msra.mxu0 %v508
          %559 = vmatprep.subr.bf16.mxu0 0
          %560 = vmatpush1.bf16.msra.mxu0 %v507
          %561 = vmatprep.subr.bf16.mxu0 0
          %562 = vmatpush1.bf16.msra.mxu0 %v506
          %563 = vmatprep.subr.bf16.mxu0 0
          %564 = vmatpush1.bf16.msra.mxu0 %v505
          %565 = vmatprep.subr.bf16.mxu0 0
          %566 = vmatpush1.bf16.msra.mxu0 %v504
          %567 = vmatprep.subr.bf16.mxu0 0
          %568 = vmatpush1.bf16.msra.mxu0 %v503
          %569 = vmatprep.subr.bf16.mxu0 0
          %570 = vmatpush1.bf16.msra.mxu0 %v502
          %571 = vmatprep.subr.bf16.mxu0 0
          %572 = vmatpush1.bf16.msra.mxu0 %v501
          %573 = vmatprep.subr.bf16.mxu0 0
          %574 = vmatpush2.bf16.msra.mxu0 0
          %575 = vmatprep.subr.bf16.mxu0 0
          %576 = vmatpush2.bf16.msra.mxu0 0
          %577 = vmatprep.subr.bf16.mxu0 0
          %578 = vmatpush2.bf16.msra.mxu0 0
          %579 = vmatprep.subr.bf16.mxu0 0
          %580 = vmatpush2.bf16.msra.mxu0 0
          %581 = vmatprep.subr.bf16.mxu0 0
          %582 = vmatpush2.bf16.msra.mxu0 0
          %583 = vmatprep.subr.bf16.mxu0 0
          %584 = vmatpush2.bf16.msra.mxu0 0
          %585 = vmatprep.subr.bf16.mxu0 0
          %586 = vmatpush2.bf16.msra.mxu0 0
          %587 = vmatprep.subr.bf16.mxu0 0
          %588 = vmatpush2.bf16.msra.mxu0 0
          %589 = vmatprep.mubr.bf16.mxu0 0
          %590 = vmatmul.mubr.bf16.gmra.mxu0 %v465
          %v591 = vpop.f32.mrf.mxu0
          %v592 = vadd.f32 %v552, %v591
          %v593 = vpop.f32.mrf.mxu0
          %v594 = vpop.f32.mrf.mxu0
          %v595 = vpop.f32.mrf.mxu0
          %596 = vdwg.mxu0
          %v597 = vsub.f32 %v464, %v592
          %v598 = vmul.f32 %v597, %v597
          %v599 = vpack.c.bf16 %v598, %v598
          %v600 = vunpack.c.l.bf16 %v599
          %v601 = vsub.f32 %v598, %v600
          %v602 = vpack.c.bf16 %v601, %v601
          %603 = vmatprep.subr.bf16.mxu0 0
          %604 = vmatpush1.bf16.msra.mxu0 %v508
          %605 = vmatprep.subr.bf16.mxu0 0
          %606 = vmatpush1.bf16.msra.mxu0 %v507
          %607 = vmatprep.subr.bf16.mxu0 0
          %608 = vmatpush1.bf16.msra.mxu0 %v506
          %609 = vmatprep.subr.bf16.mxu0 0
          %610 = vmatpush1.bf16.msra.mxu0 %v505
          %611 = vmatprep.subr.bf16.mxu0 0
          %612 = vmatpush1.bf16.msra.mxu0 %v504
          %613 = vmatprep.subr.bf16.mxu0 0
          %614 = vmatpush1.bf16.msra.mxu0 %v503
          %615 = vmatprep.subr.bf16.mxu0 0
          %616 = vmatpush1.bf16.msra.mxu0 %v502
          %617 = vmatprep.subr.bf16.mxu0 0
          %618 = vmatpush1.bf16.msra.mxu0 %v501
          %619 = vmatprep.subr.bf16.mxu0 0
          %620 = vmatpush2.bf16.msra.mxu0 0
          %621 = vmatprep.subr.bf16.mxu0 0
          %622 = vmatpush2.bf16.msra.mxu0 0
          %623 = vmatprep.subr.bf16.mxu0 0
          %624 = vmatpush2.bf16.msra.mxu0 0
          %625 = vmatprep.subr.bf16.mxu0 0
          %626 = vmatpush2.bf16.msra.mxu0 0
          %627 = vmatprep.subr.bf16.mxu0 0
          %628 = vmatpush2.bf16.msra.mxu0 0
          %629 = vmatprep.subr.bf16.mxu0 0
          %630 = vmatpush2.bf16.msra.mxu0 0
          %631 = vmatprep.subr.bf16.mxu0 0
          %632 = vmatpush2.bf16.msra.mxu0 0
          %633 = vmatprep.subr.bf16.mxu0 0
          %634 = vmatpush2.bf16.msra.mxu0 0
          %635 = vmatprep.mubr.bf16.mxu0 0
          %636 = vmatmul.mubr.bf16.gmra.mxu0 %v602
          %v637 = vpop.f32.mrf.mxu0
          %v638 = vadd.f32 0.0, %v637
          %v639 = vpop.f32.mrf.mxu0
          %v640 = vpop.f32.mrf.mxu0
          %v641 = vpop.f32.mrf.mxu0
          %642 = vdwg.mxu0
          %643 = vmatprep.subr.bf16.mxu0 0
          %644 = vmatpush1.bf16.msra.mxu0 %v508
          %645 = vmatprep.subr.bf16.mxu0 0
          %646 = vmatpush1.bf16.msra.mxu0 %v507
          %647 = vmatprep.subr.bf16.mxu0 0
          %648 = vmatpush1.bf16.msra.mxu0 %v506
          %649 = vmatprep.subr.bf16.mxu0 0
          %650 = vmatpush1.bf16.msra.mxu0 %v505
          %651 = vmatprep.subr.bf16.mxu0 0
          %652 = vmatpush1.bf16.msra.mxu0 %v504
          %653 = vmatprep.subr.bf16.mxu0 0
          %654 = vmatpush1.bf16.msra.mxu0 %v503
          %655 = vmatprep.subr.bf16.mxu0 0
          %656 = vmatpush1.bf16.msra.mxu0 %v502
          %657 = vmatprep.subr.bf16.mxu0 0
          %658 = vmatpush1.bf16.msra.mxu0 %v501
          %659 = vmatprep.subr.bf16.mxu0 0
          %660 = vmatpush2.bf16.msra.mxu0 0
          %661 = vmatprep.subr.bf16.mxu0 0
          %662 = vmatpush2.bf16.msra.mxu0 0
          %663 = vmatprep.subr.bf16.mxu0 0
          %664 = vmatpush2.bf16.msra.mxu0 0
          %665 = vmatprep.subr.bf16.mxu0 0
          %666 = vmatpush2.bf16.msra.mxu0 0
          %667 = vmatprep.subr.bf16.mxu0 0
          %668 = vmatpush2.bf16.msra.mxu0 0
          %669 = vmatprep.subr.bf16.mxu0 0
          %670 = vmatpush2.bf16.msra.mxu0 0
          %671 = vmatprep.subr.bf16.mxu0 0
          %672 = vmatpush2.bf16.msra.mxu0 0
          %673 = vmatprep.subr.bf16.mxu0 0
          %674 = vmatpush2.bf16.msra.mxu0 0
          %675 = vmatprep.mubr.bf16.mxu0 0
          %676 = vmatmul.mubr.bf16.gmra.mxu0 %v599
          %v677 = vpop.f32.mrf.mxu0
          %v678 = vadd.f32 %v638, %v677
          %v679 = vpop.f32.mrf.mxu0
          %v680 = vpop.f32.mrf.mxu0
          %v681 = vpop.f32.mrf.mxu0
          %682 = vdwg.mxu0
          %v683 = vadd.f32 %v678, 1e-05
          %v684 = vrsqrt.pop %v683
          %v685 = vmul.f32 %v597, %v684
          %v687 = vlaneseq
          %v688 = vshrl.u32 %v687, 7
          %v689 = vsub.s32 0, %v688
          %v690 = vrot.slane %v458, %v689
          %v692 = vmul.f32 %v685, %v690
          %v694 = vlaneseq
          %v695 = vshrl.u32 %v694, 7
          %v696 = vsub.s32 0, %v695
          %v697 = vrot.slane %v459, %v696
          %v699 = vadd.f32 %v692, %v697
          %700 = vst [vmem:[%s435] sm:$0xff] %v699
        $region76: #{tpu_custom_call.1} parent=51 // pred_fallthru
          _
        %p701 = scmp.ge.s32.totalorder %s34, 1
        // Predicated region
        $region77: #{tpu_custom_call.1} parent=51 // pred_check
          %p702 = pneg %p701
        $region78: #{tpu_custom_call.1} parent=51 // pred_check_branch
          %704 = sbr.rel (%p702) target = $region80
        $region79: #{tpu_custom_call.1} parent=51 // pred_region
          %v705 = vld [vmem:[%s386] sm:$0xff]
          %v706 = vpack.c.bf16 %v705, %v705
          %v707 = vunpack.c.l.bf16 %v706
          %v708 = vsub.f32 %v705, %v707
          %v709 = vpack.c.bf16 %v708, %v708
          %v710 = vld [vmem:[#allocation7] sm:$0xf]
          %v711 = vld [vmem:[#allocation7 + $0x4] sm:$0xf]
          %v712 = vld [vmem:[#allocation7 + $0x8] sm:$0xf]
          %v713 = vld [vmem:[#allocation7 + $0xc] sm:$0xf]
          %v714 = vld [vmem:[#allocation7 + $0x10] sm:$0xf]
          %v715 = vld [vmem:[#allocation7 + $0x14] sm:$0xf]
          %v716 = vld [vmem:[#allocation7 + $0x18] sm:$0xf]
          %v717 = vld [vmem:[#allocation7 + $0x1c] sm:$0xf]
          %v718 = vld [vmem:[#allocation7 + $0x20] sm:$0xf]
          %v719 = vld [vmem:[#allocation7 + $0x24] sm:$0xf]
          %v730 = vunpack.c.l.b16 %v710
          %v731 = vunpack.c.l.b16 %v711
          %v732 = vunpack.c.l.b16 %v712
          %v733 = vunpack.c.l.b16 %v713
          %v734 = vunpack.c.l.b16 %v714
          %v735 = vunpack.c.l.b16 %v715
          %v736 = vunpack.c.l.b16 %v716
          %v737 = vunpack.c.l.b16 %v717
          %v738 = vunpack.c.l.b16 %v718
          %v739 = vunpack.c.l.b16 %v719
          %v740 = vpack.c.b16 %v731, %v730
          %v741 = vpack.c.b16 %v733, %v732
          %v742 = vpack.c.b16 %v735, %v734
          %v743 = vpack.c.b16 %v737, %v736
          %v744 = vpack.c.b16 %v739, %v738
          %vm750 = vcmask 654336
          %v752 = vsel %vm750, %v709, 0
          %754 = vmatprep.subr.bf16.mxu0 0
          %755 = vmatpush1.bf16.msra.mxu0 0
          %756 = vmatprep.subr.bf16.mxu0 0
          %757 = vmatpush1.bf16.msra.mxu0 0
          %758 = vmatprep.subr.bf16.mxu0 0
          %759 = vmatpush1.bf16.msra.mxu0 0
          %760 = vmatprep.subr.bf16.mxu0 0
          %761 = vmatpush1.bf16.msra.mxu0 %v744
          %762 = vmatprep.subr.bf16.mxu0 0
          %763 = vmatpush1.bf16.msra.mxu0 %v743
          %764 = vmatprep.subr.bf16.mxu0 0
          %765 = vmatpush1.bf16.msra.mxu0 %v742
          %766 = vmatprep.subr.bf16.mxu0 0
          %767 = vmatpush1.bf16.msra.mxu0 %v741
          %768 = vmatprep.subr.bf16.mxu0 0
          %769 = vmatpush1.bf16.msra.mxu0 %v740
          %770 = vmatprep.subr.bf16.mxu0 0
          %771 = vmatpush2.bf16.msra.mxu0 0
          %772 = vmatprep.subr.bf16.mxu0 0
          %773 = vmatpush2.bf16.msra.mxu0 0
          %774 = vmatprep.subr.bf16.mxu0 0
          %775 = vmatpush2.bf16.msra.mxu0 0
          %776 = vmatprep.subr.bf16.mxu0 0
          %777 = vmatpush2.bf16.msra.mxu0 0
          %778 = vmatprep.subr.bf16.mxu0 0
          %779 = vmatpush2.bf16.msra.mxu0 0
          %780 = vmatprep.subr.bf16.mxu0 0
          %781 = vmatpush2.bf16.msra.mxu0 0
          %782 = vmatprep.subr.bf16.mxu0 0
          %783 = vmatpush2.bf16.msra.mxu0 0
          %784 = vmatprep.subr.bf16.mxu0 0
          %785 = vmatpush2.bf16.msra.mxu0 0
          %786 = vmatprep.mubr.bf16.mxu0 0
          %787 = vmatmul.mubr.bf16.gmra.mxu0 %v752
          %v788 = vpop.f32.mrf.mxu0
          %v789 = vadd.f32 0.0, %v788
          %v790 = vpop.f32.mrf.mxu0
          %v791 = vpop.f32.mrf.mxu0
          %v792 = vpop.f32.mrf.mxu0
          %793 = vdwg.mxu0
          %v795 = vsel %vm750, %v706, 0
          %797 = vmatprep.subr.bf16.mxu0 0
          %798 = vmatpush1.bf16.msra.mxu0 0
          %799 = vmatprep.subr.bf16.mxu0 0
          %800 = vmatpush1.bf16.msra.mxu0 0
          %801 = vmatprep.subr.bf16.mxu0 0
          %802 = vmatpush1.bf16.msra.mxu0 0
          %803 = vmatprep.subr.bf16.mxu0 0
          %804 = vmatpush1.bf16.msra.mxu0 %v744
          %805 = vmatprep.subr.bf16.mxu0 0
          %806 = vmatpush1.bf16.msra.mxu0 %v743
          %807 = vmatprep.subr.bf16.mxu0 0
          %808 = vmatpush1.bf16.msra.mxu0 %v742
          %809 = vmatprep.subr.bf16.mxu0 0
          %810 = vmatpush1.bf16.msra.mxu0 %v741
          %811 = vmatprep.subr.bf16.mxu0 0
          %812 = vmatpush1.bf16.msra.mxu0 %v740
          %813 = vmatprep.subr.bf16.mxu0 0
          %814 = vmatpush2.bf16.msra.mxu0 0
          %815 = vmatprep.subr.bf16.mxu0 0
          %816 = vmatpush2.bf16.msra.mxu0 0
          %817 = vmatprep.subr.bf16.mxu0 0
          %818 = vmatpush2.bf16.msra.mxu0 0
          %819 = vmatprep.subr.bf16.mxu0 0
          %820 = vmatpush2.bf16.msra.mxu0 0
          %821 = vmatprep.subr.bf16.mxu0 0
          %822 = vmatpush2.bf16.msra.mxu0 0
          %823 = vmatprep.subr.bf16.mxu0 0
          %824 = vmatpush2.bf16.msra.mxu0 0
          %825 = vmatprep.subr.bf16.mxu0 0
          %826 = vmatpush2.bf16.msra.mxu0 0
          %827 = vmatprep.subr.bf16.mxu0 0
          %828 = vmatpush2.bf16.msra.mxu0 0
          %829 = vmatprep.mubr.bf16.mxu0 0
          %830 = vmatmul.mubr.bf16.gmra.mxu0 %v795
          %v831 = vpop.f32.mrf.mxu0
          %v832 = vadd.f32 %v789, %v831
          %v833 = vpop.f32.mrf.mxu0
          %v834 = vpop.f32.mrf.mxu0
          %v835 = vpop.f32.mrf.mxu0
          %836 = vdwg.mxu0
          %v837 = vld [vmem:[#allocation8] sm:$0xf]
          %v838 = vld [vmem:[#allocation8 + $0x4] sm:$0xf]
          %v839 = vld [vmem:[#allocation8 + $0x8] sm:$0xf]
          %v840 = vld [vmem:[#allocation8 + $0xc] sm:$0xf]
          %v841 = vld [vmem:[#allocation8 + $0x10] sm:$0xf]
          %v842 = vld [vmem:[#allocation8 + $0x14] sm:$0xf]
          %v843 = vld [vmem:[#allocation8 + $0x18] sm:$0xf]
          %v844 = vld [vmem:[#allocation8 + $0x1c] sm:$0xf]
          %v845 = vld [vmem:[#allocation8 + $0x20] sm:$0xf]
          %v846 = vld [vmem:[#allocation8 + $0x24] sm:$0xf]
          %v857 = vunpack.c.l.b16 %v837
          %v858 = vunpack.c.l.b16 %v838
          %v859 = vunpack.c.l.b16 %v839
          %v860 = vunpack.c.l.b16 %v840
          %v861 = vunpack.c.l.b16 %v841
          %v862 = vunpack.c.l.b16 %v842
          %v863 = vunpack.c.l.b16 %v843
          %v864 = vunpack.c.l.b16 %v844
          %v865 = vunpack.c.l.b16 %v845
          %v866 = vunpack.c.l.b16 %v846
          %v867 = vpack.c.b16 %v858, %v857
          %v868 = vpack.c.b16 %v860, %v859
          %v869 = vpack.c.b16 %v862, %v861
          %v870 = vpack.c.b16 %v864, %v863
          %v871 = vpack.c.b16 %v866, %v865
          %877 = vmatprep.subr.bf16.mxu0 0
          %878 = vmatpush1.bf16.msra.mxu0 0
          %879 = vmatprep.subr.bf16.mxu0 0
          %880 = vmatpush1.bf16.msra.mxu0 0
          %881 = vmatprep.subr.bf16.mxu0 0
          %882 = vmatpush1.bf16.msra.mxu0 0
          %883 = vmatprep.subr.bf16.mxu0 0
          %884 = vmatpush1.bf16.msra.mxu0 %v871
          %885 = vmatprep.subr.bf16.mxu0 0
          %886 = vmatpush1.bf16.msra.mxu0 %v870
          %887 = vmatprep.subr.bf16.mxu0 0
          %888 = vmatpush1.bf16.msra.mxu0 %v869
          %889 = vmatprep.subr.bf16.mxu0 0
          %890 = vmatpush1.bf16.msra.mxu0 %v868
          %891 = vmatprep.subr.bf16.mxu0 0
          %892 = vmatpush1.bf16.msra.mxu0 %v867
          %893 = vmatprep.subr.bf16.mxu0 0
          %894 = vmatpush2.bf16.msra.mxu0 0
          %895 = vmatprep.subr.bf16.mxu0 0
          %896 = vmatpush2.bf16.msra.mxu0 0
          %897 = vmatprep.subr.bf16.mxu0 0
          %898 = vmatpush2.bf16.msra.mxu0 0
          %899 = vmatprep.subr.bf16.mxu0 0
          %900 = vmatpush2.bf16.msra.mxu0 0
          %901 = vmatprep.subr.bf16.mxu0 0
          %902 = vmatpush2.bf16.msra.mxu0 0
          %903 = vmatprep.subr.bf16.mxu0 0
          %904 = vmatpush2.bf16.msra.mxu0 0
          %905 = vmatprep.subr.bf16.mxu0 0
          %906 = vmatpush2.bf16.msra.mxu0 0
          %907 = vmatprep.subr.bf16.mxu0 0
          %908 = vmatpush2.bf16.msra.mxu0 0
          %909 = vmatprep.mubr.bf16.mxu0 0
          %910 = vmatmul.mubr.bf16.gmra.mxu0 %v795
          %v911 = vpop.f32.mrf.mxu0
          %v912 = vadd.f32 0.0, %v911
          %v913 = vpop.f32.mrf.mxu0
          %v914 = vpop.f32.mrf.mxu0
          %v915 = vpop.f32.mrf.mxu0
          %916 = vdwg.mxu0
          %v917 = vadd.f32 %v832, %v912
          %v918 = vld [vmem:[%s4] sm:$0x1]
          %v920 = vlaneseq
          %v921 = vshrl.u32 %v920, 7
          %v922 = vsub.s32 0, %v921
          %v923 = vrot.slane %v918, %v922
          %v925 = vadd.f32 %v917, %v923
          %v926 = vmax.f32 %v925, 0.0
          %v927 = vpack.c.bf16 %v926, %v926
          %v928 = vunpack.c.l.bf16 %v927
          %v929 = vsub.f32 %v926, %v928
          %v930 = vpack.c.bf16 %v929, %v929
          %v947 = vunpack.c.l.b16 %v442
          %v948 = vunpack.c.l.b16 %v443
          %v949 = vunpack.c.l.b16 %v444
          %v950 = vunpack.c.l.b16 %v445
          %v951 = vunpack.c.l.b16 %v446
          %v952 = vunpack.c.l.b16 %v447
          %v953 = vunpack.c.l.b16 %v448
          %v954 = vunpack.c.l.b16 %v449
          %v955 = vunpack.c.l.b16 %v450
          %v956 = vunpack.c.l.b16 %v451
          %v957 = vunpack.c.l.b16 %v452
          %v958 = vunpack.c.l.b16 %v453
          %v959 = vunpack.c.l.b16 %v454
          %v960 = vunpack.c.l.b16 %v455
          %v961 = vunpack.c.l.b16 %v456
          %v962 = vunpack.c.l.b16 %v457
          %v963 = vpack.c.b16 %v948, %v947
          %v964 = vpack.c.b16 %v950, %v949
          %v965 = vpack.c.b16 %v952, %v951
          %v966 = vpack.c.b16 %v954, %v953
          %v967 = vpack.c.b16 %v956, %v955
          %v968 = vpack.c.b16 %v958, %v957
          %v969 = vpack.c.b16 %v960, %v959
          %v970 = vpack.c.b16 %v962, %v961
          %979 = vmatprep.subr.bf16.mxu0 0
          %980 = vmatpush1.bf16.msra.mxu0 %v970
          %981 = vmatprep.subr.bf16.mxu0 0
          %982 = vmatpush1.bf16.msra.mxu0 %v969
          %983 = vmatprep.subr.bf16.mxu0 0
          %984 = vmatpush1.bf16.msra.mxu0 %v968
          %985 = vmatprep.subr.bf16.mxu0 0
          %986 = vmatpush1.bf16.msra.mxu0 %v967
          %987 = vmatprep.subr.bf16.mxu0 0
          %988 = vmatpush1.bf16.msra.mxu0 %v966
          %989 = vmatprep.subr.bf16.mxu0 0
          %990 = vmatpush1.bf16.msra.mxu0 %v965
          %991 = vmatprep.subr.bf16.mxu0 0
          %992 = vmatpush1.bf16.msra.mxu0 %v964
          %993 = vmatprep.subr.bf16.mxu0 0
          %994 = vmatpush1.bf16.msra.mxu0 %v963
          %995 = vmatprep.subr.bf16.mxu0 0
          %996 = vmatpush2.bf16.msra.mxu0 0
          %997 = vmatprep.subr.bf16.mxu0 0
          %998 = vmatpush2.bf16.msra.mxu0 0
          %999 = vmatprep.subr.bf16.mxu0 0
          %1000 = vmatpush2.bf16.msra.mxu0 0
          %1001 = vmatprep.subr.bf16.mxu0 0
          %1002 = vmatpush2.bf16.msra.mxu0 0
          %1003 = vmatprep.subr.bf16.mxu0 0
          %1004 = vmatpush2.bf16.msra.mxu0 0
          %1005 = vmatprep.subr.bf16.mxu0 0
          %1006 = vmatpush2.bf16.msra.mxu0 0
          %1007 = vmatprep.subr.bf16.mxu0 0
          %1008 = vmatpush2.bf16.msra.mxu0 0
          %1009 = vmatprep.subr.bf16.mxu0 0
          %1010 = vmatpush2.bf16.msra.mxu0 0
          %1011 = vmatprep.mubr.bf16.mxu0 0
          %1012 = vmatmul.mubr.bf16.gmra.mxu0 %v930
          %v1013 = vpop.f32.mrf.mxu0
          %v1014 = vadd.f32 0.0, %v1013
          %v1015 = vpop.f32.mrf.mxu0
          %v1016 = vpop.f32.mrf.mxu0
          %v1017 = vpop.f32.mrf.mxu0
          %1018 = vdwg.mxu0
          %1019 = vmatprep.subr.bf16.mxu0 0
          %1020 = vmatpush1.bf16.msra.mxu0 %v970
          %1021 = vmatprep.subr.bf16.mxu0 0
          %1022 = vmatpush1.bf16.msra.mxu0 %v969
          %1023 = vmatprep.subr.bf16.mxu0 0
          %1024 = vmatpush1.bf16.msra.mxu0 %v968
          %1025 = vmatprep.subr.bf16.mxu0 0
          %1026 = vmatpush1.bf16.msra.mxu0 %v967
          %1027 = vmatprep.subr.bf16.mxu0 0
          %1028 = vmatpush1.bf16.msra.mxu0 %v966
          %1029 = vmatprep.subr.bf16.mxu0 0
          %1030 = vmatpush1.bf16.msra.mxu0 %v965
          %1031 = vmatprep.subr.bf16.mxu0 0
          %1032 = vmatpush1.bf16.msra.mxu0 %v964
          %1033 = vmatprep.subr.bf16.mxu0 0
          %1034 = vmatpush1.bf16.msra.mxu0 %v963
          %1035 = vmatprep.subr.bf16.mxu0 0
          %1036 = vmatpush2.bf16.msra.mxu0 0
          %1037 = vmatprep.subr.bf16.mxu0 0
          %1038 = vmatpush2.bf16.msra.mxu0 0
          %1039 = vmatprep.subr.bf16.mxu0 0
          %1040 = vmatpush2.bf16.msra.mxu0 0
          %1041 = vmatprep.subr.bf16.mxu0 0
          %1042 = vmatpush2.bf16.msra.mxu0 0
          %1043 = vmatprep.subr.bf16.mxu0 0
          %1044 = vmatpush2.bf16.msra.mxu0 0
          %1045 = vmatprep.subr.bf16.mxu0 0
          %1046 = vmatpush2.bf16.msra.mxu0 0
          %1047 = vmatprep.subr.bf16.mxu0 0
          %1048 = vmatpush2.bf16.msra.mxu0 0
          %1049 = vmatprep.subr.bf16.mxu0 0
          %1050 = vmatpush2.bf16.msra.mxu0 0
          %1051 = vmatprep.mubr.bf16.mxu0 0
          %1052 = vmatmul.mubr.bf16.gmra.mxu0 %v927
          %v1053 = vpop.f32.mrf.mxu0
          %v1054 = vadd.f32 %v1014, %v1053
          %v1055 = vpop.f32.mrf.mxu0
          %v1056 = vpop.f32.mrf.mxu0
          %v1057 = vpop.f32.mrf.mxu0
          %1058 = vdwg.mxu0
          %v1059 = vsub.f32 %v926, %v1054
          %v1060 = vmul.f32 %v1059, %v1059
          %v1061 = vpack.c.bf16 %v1060, %v1060
          %v1062 = vunpack.c.l.bf16 %v1061
          %v1063 = vsub.f32 %v1060, %v1062
          %v1064 = vpack.c.bf16 %v1063, %v1063
          %1065 = vmatprep.subr.bf16.mxu0 0
          %1066 = vmatpush1.bf16.msra.mxu0 %v970
          %1067 = vmatprep.subr.bf16.mxu0 0
          %1068 = vmatpush1.bf16.msra.mxu0 %v969
          %1069 = vmatprep.subr.bf16.mxu0 0
          %1070 = vmatpush1.bf16.msra.mxu0 %v968
          %1071 = vmatprep.subr.bf16.mxu0 0
          %1072 = vmatpush1.bf16.msra.mxu0 %v967
          %1073 = vmatprep.subr.bf16.mxu0 0
          %1074 = vmatpush1.bf16.msra.mxu0 %v966
          %1075 = vmatprep.subr.bf16.mxu0 0
          %1076 = vmatpush1.bf16.msra.mxu0 %v965
          %1077 = vmatprep.subr.bf16.mxu0 0
          %1078 = vmatpush1.bf16.msra.mxu0 %v964
          %1079 = vmatprep.subr.bf16.mxu0 0
          %1080 = vmatpush1.bf16.msra.mxu0 %v963
          %1081 = vmatprep.subr.bf16.mxu0 0
          %1082 = vmatpush2.bf16.msra.mxu0 0
          %1083 = vmatprep.subr.bf16.mxu0 0
          %1084 = vmatpush2.bf16.msra.mxu0 0
          %1085 = vmatprep.subr.bf16.mxu0 0
          %1086 = vmatpush2.bf16.msra.mxu0 0
          %1087 = vmatprep.subr.bf16.mxu0 0
          %1088 = vmatpush2.bf16.msra.mxu0 0
          %1089 = vmatprep.subr.bf16.mxu0 0
          %1090 = vmatpush2.bf16.msra.mxu0 0
          %1091 = vmatprep.subr.bf16.mxu0 0
          %1092 = vmatpush2.bf16.msra.mxu0 0
          %1093 = vmatprep.subr.bf16.mxu0 0
          %1094 = vmatpush2.bf16.msra.mxu0 0
          %1095 = vmatprep.subr.bf16.mxu0 0
          %1096 = vmatpush2.bf16.msra.mxu0 0
          %1097 = vmatprep.mubr.bf16.mxu0 0
          %1098 = vmatmul.mubr.bf16.gmra.mxu0 %v1064
          %v1099 = vpop.f32.mrf.mxu0
          %v1100 = vadd.f32 0.0, %v1099
          %v1101 = vpop.f32.mrf.mxu0
          %v1102 = vpop.f32.mrf.mxu0
          %v1103 = vpop.f32.mrf.mxu0
          %1104 = vdwg.mxu0
          %1105 = vmatprep.subr.bf16.mxu0 0
          %1106 = vmatpush1.bf16.msra.mxu0 %v970
          %1107 = vmatprep.subr.bf16.mxu0 0
          %1108 = vmatpush1.bf16.msra.mxu0 %v969
          %1109 = vmatprep.subr.bf16.mxu0 0
          %1110 = vmatpush1.bf16.msra.mxu0 %v968
          %1111 = vmatprep.subr.bf16.mxu0 0
          %1112 = vmatpush1.bf16.msra.mxu0 %v967
          %1113 = vmatprep.subr.bf16.mxu0 0
          %1114 = vmatpush1.bf16.msra.mxu0 %v966
          %1115 = vmatprep.subr.bf16.mxu0 0
          %1116 = vmatpush1.bf16.msra.mxu0 %v965
          %1117 = vmatprep.subr.bf16.mxu0 0
          %1118 = vmatpush1.bf16.msra.mxu0 %v964
          %1119 = vmatprep.subr.bf16.mxu0 0
          %1120 = vmatpush1.bf16.msra.mxu0 %v963
          %1121 = vmatprep.subr.bf16.mxu0 0
          %1122 = vmatpush2.bf16.msra.mxu0 0
          %1123 = vmatprep.subr.bf16.mxu0 0
          %1124 = vmatpush2.bf16.msra.mxu0 0
          %1125 = vmatprep.subr.bf16.mxu0 0
          %1126 = vmatpush2.bf16.msra.mxu0 0
          %1127 = vmatprep.subr.bf16.mxu0 0
          %1128 = vmatpush2.bf16.msra.mxu0 0
          %1129 = vmatprep.subr.bf16.mxu0 0
          %1130 = vmatpush2.bf16.msra.mxu0 0
          %1131 = vmatprep.subr.bf16.mxu0 0
          %1132 = vmatpush2.bf16.msra.mxu0 0
          %1133 = vmatprep.subr.bf16.mxu0 0
          %1134 = vmatpush2.bf16.msra.mxu0 0
          %1135 = vmatprep.subr.bf16.mxu0 0
          %1136 = vmatpush2.bf16.msra.mxu0 0
          %1137 = vmatprep.mubr.bf16.mxu0 0
          %1138 = vmatmul.mubr.bf16.gmra.mxu0 %v1061
          %v1139 = vpop.f32.mrf.mxu0
          %v1140 = vadd.f32 %v1100, %v1139
          %v1141 = vpop.f32.mrf.mxu0
          %v1142 = vpop.f32.mrf.mxu0
          %v1143 = vpop.f32.mrf.mxu0
          %1144 = vdwg.mxu0
          %v1145 = vadd.f32 %v1140, 1e-05
          %v1146 = vrsqrt.pop %v1145
          %v1147 = vmul.f32 %v1059, %v1146
          %v1149 = vlaneseq
          %v1150 = vshrl.u32 %v1149, 7
          %v1151 = vsub.s32 0, %v1150
          %v1152 = vrot.slane %v458, %v1151
          %v1154 = vmul.f32 %v1147, %v1152
          %v1156 = vlaneseq
          %v1157 = vshrl.u32 %v1156, 7
          %v1158 = vsub.s32 0, %v1157
          %v1159 = vrot.slane %v459, %v1158
          %v1161 = vadd.f32 %v1154, %v1159
          %1162 = vst [vmem:[%s435] sm:$0xff] %v1161
        $region80: #{tpu_custom_call.1} parent=51 // pred_fallthru
          _
        %s1163 = sand.u32 %s243, 1
        %s1164 = scalar_lea.sflag [#allocation4], %s1163
        %s1165 = sand.u32 %s243, 1
        %s1166 = smul.addr %s1165, 8
        %s1167 = scalar_lea.vmem [#allocation11], %s1166
        // Predicated region
        $region81: #{tpu_custom_call.1} parent=51 // pred_check
          %p1168 = pneg %p253
        $region82: #{tpu_custom_call.1} parent=51 // pred_check_branch
          %1170 = sbr.rel (%p1168) target = $region84
        $region83: #{tpu_custom_call.1} parent=51 // pred_region
          %s1172 = ssub.s32 128, 128
          %1173 = vsyncadd %s1164, %s1172
          %s1174 = smul.addr %s33, 2
          %s1175 = sadd.s32 %s34, %s1174
          %s1176 = smul.addr %s1175, 128
          %s1177 = scalar_lea.hbm %s8, %s1176
          %s1179 = sshll.u32 %s1167, 4
          %s1180 = int_to_ptr.vmem [resolvable:$true] %s1179
          %1182 = dma.vmem_to_hbm [thread:$0]  %s1180, 128, %s1177, %s1164
        $region84: #{tpu_custom_call.1} parent=51 // pred_fallthru
          _
      $region52: #{tpu_custom_call.1} parent=5 // pred_fallthru
        _
      %p1183 = scmp.le.s32.totalorder 2, %s24
      // Predicated region
      $region85: #{tpu_custom_call.1} parent=5 // pred_check
        %p1184 = pneg %p1183
      $region86: #{tpu_custom_call.1} parent=5 // pred_check_branch
        %1186 = sbr.rel (%p1184) target = $region88
      $region87: #{tpu_custom_call.1} parent=5 // pred_region
        %s1187 = ssub.s32 %s24, 2
        // Predicated region
        $region89: #{tpu_custom_call.1} parent=87 // pred_check
          %p1188 = pneg %p259
        $region90: #{tpu_custom_call.1} parent=87 // pred_check_branch
          %1190 = sbr.rel (%p1188) target = $region92
        $region91: #{tpu_custom_call.1} parent=87 // pred_region
          %s1191 = sand.u32 %s244, 1
          %s1192 = scalar_lea.sflag [#allocation4], %s1191
          %s1193 = sand.u32 %s244, 1
          %s1194 = smul.addr %s1193, 8
          %s1195 = scalar_lea.vmem [#allocation11], %s1194
          %1196 = dma.done %s1192, 128
        $region92: #{tpu_custom_call.1} parent=87 // pred_fallthru
          _
      $region88: #{tpu_custom_call.1} parent=5 // pred_fallthru
        _
    $region6: #{tpu_custom_call.1} parent=1 // loop_footer
      %s28 = sadd.s32 1, %s24
    $region7: #{tpu_custom_call.1} parent=1 // loop_footer_branch
      %23 = sbr.rel target = $region3
    $region8: #{tpu_custom_call.1} parent=1 // loop_exit
      _
    %1197 = vsyncpa [#allocation3], 1
    %s1198 = scalar_lea.sflag [#allocation3], 1
    %1199 = vsyncpa %s1198, 1
    %1200 = vsyncpa [#allocation6], 1
    %s1201 = scalar_lea.sflag [#allocation6], 1
    %1202 = vsyncpa %s1201, 1
    %1203 = vsyncpa [#allocation9], 1
    %1204 = vsyncpa [#allocation4], 1
    %s1205 = scalar_lea.sflag [#allocation4], 1
    %1206 = vsyncpa %s1205, 1

</llo_original>
